<compile_context>
chip_gen: v5e
topology: v5e:2x2
jax: 0.10.0
libtpu: 0.0.40
codegen_flags: <defaults>
</compile_context>

<pallas_src>
import jax
import jax.numpy as jnp
from jax.experimental import pallas as pl
from jax.experimental.pallas import tpu as pltpu

INPUT_SIZE = 2
HIDDEN = 63
HP = 128          # per-gate lane padding (one full 128-lane tile per gate)
SUBLANE = 8       # f32 sublane multiple -> batch padded up to this


def _sigmoid(x):
    # Single EUP transcendental (tanh) instead of exp + add + reciprocal.
    return 0.5 * jnp.tanh(0.5 * x) + 0.5


def lstm_kernel(x_ref, wih_ref, whh_ref, b_ref, wfc_ref, bfc_ref, out_ref):
    # x_ref:   (Bp, T*I)   row b, cols [I*t, I*t+1] = x[b, t, :]
    # wih_ref: (I, 4*HP)   gate k in cols [k*HP, k*HP+H), pad cols zero
    # whh_ref: (HP, 4*HP)  rows >= H and pad cols zero
    # b_ref:   (1, 4*HP)   (b_ih + b_hh), pad lanes zero
    # wfc_ref: (1, HP)     fc weight, pad lanes zero
    # bfc_ref: (1, 1)
    # out_ref: (Bp, 1)
    Bp = out_ref.shape[0]
    TI = x_ref.shape[1]
    T = TI // INPUT_SIZE
    HPk = whh_ref.shape[0]

    # Load recurrent weights / biases once, outside the unrolled chain.
    whh = whh_ref[...]
    bias = b_ref[...]
    wih0 = wih_ref[0:1, :]            # (1, 4*HP)
    wih1 = wih_ref[1:2, :]            # (1, 4*HP)
    x = x_ref[...]                    # (Bp, T*I) -- one (8,128) tile

    h = jnp.zeros((Bp, HPk), jnp.float32)
    c = jnp.zeros((Bp, HPk), jnp.float32)

    # T is static -> fully unrolled at trace time; all gate slices 128-aligned,
    # all timestep state full-sublane tiles.
    for t in range(T):
        # Input projection for this step on the VPU (independent of h -> off
        # the serial dependency chain; scheduler can run it ahead).
        x0 = x[:, INPUT_SIZE * t:INPUT_SIZE * t + 1]        # (Bp, 1)
        x1 = x[:, INPUT_SIZE * t + 1:INPUT_SIZE * t + 2]    # (Bp, 1)
        pre_t = bias + x0 * wih0 + x1 * wih1                 # (Bp, 4*HP)

        # TODO(synk): if the bundle dump shows Mosaic re-streaming whh into the
        # MXU each step, switch to explicit weight-stationary driving with
        # pltpu.matmul_push_rhs / matmul_acc_lhs / matmul_pop.
        gates = pre_t + jnp.dot(h, whh, preferred_element_type=jnp.float32)

        i_g = _sigmoid(gates[:, 0 * HPk:1 * HPk])
        f_g = _sigmoid(gates[:, 1 * HPk:2 * HPk])
        g_g = jnp.tanh(gates[:, 2 * HPk:3 * HPk])
        o_g = _sigmoid(gates[:, 3 * HPk:4 * HPk])
        c = f_g * c + i_g * g_g
        h = o_g * jnp.tanh(c)

    # h_n[-1] -> ReLU -> Linear(63,1) -> Sigmoid.
    # FC head as VPU mul + lane reduction (padded wfc lanes are zero).
    h_relu = jnp.maximum(h, 0.0)
    logits = jnp.sum(h_relu * wfc_ref[...], axis=-1, keepdims=True) + bfc_ref[...]
    out_ref[...] = _sigmoid(logits).astype(out_ref.dtype)


def prepare_params(params, hp=HP):
    """One-time layout prep: transpose + pad weights to 128-lane-aligned gates.

    All pad rows / columns / lanes MUST stay exactly zero (see invariant above).
    """
    w_ih, w_hh, b_ih, b_hh, w_fc, b_fc = params
    H = w_hh.shape[1]
    I = w_ih.shape[1]
    b = b_ih + b_hh

    wih_p = jnp.zeros((I, 4 * hp), jnp.float32)
    whh_p = jnp.zeros((hp, 4 * hp), jnp.float32)
    b_p = jnp.zeros((1, 4 * hp), jnp.float32)
    wfc_p = jnp.zeros((1, hp), jnp.float32)

    for k in range(4):                       # PyTorch gate order: i, f, g, o
        wih_p = wih_p.at[:, k * hp:k * hp + H].set(w_ih[k * H:(k + 1) * H, :].T)
        whh_p = whh_p.at[:H, k * hp:k * hp + H].set(w_hh[k * H:(k + 1) * H, :].T)
        b_p = b_p.at[:, k * hp:k * hp + H].set(b[k * H:(k + 1) * H])
    wfc_p = wfc_p.at[:, :H].set(w_fc[0])
    bfc_p = b_fc.reshape(1, 1)
    return (wih_p, whh_p, b_p, wfc_p, bfc_p)


def lstm_forward(x, prepared):
    """x: (B, T, I) batch_first float32.  Returns (B, 1) float32."""
    wih_p, whh_p, b_p, wfc_p, bfc_p = prepared
    B, T, I = x.shape
    Bp = ((B + SUBLANE - 1) // SUBLANE) * SUBLANE

    # No transpose: (B, T, I) -> (B, T*I) is a free contiguous reshape; pad the
    # batch up to a full sublane tile (padded rows are dropped after the call).
    x_flat = x.reshape(B, T * I)
    if Bp != B:
        x_flat = jnp.pad(x_flat, ((0, Bp - B), (0, 0)))

    vmem = pl.BlockSpec(memory_space=pltpu.MemorySpace.VMEM)
    out = pl.pallas_call(
        lstm_kernel,
        out_shape=jax.ShapeDtypeStruct((Bp, 1), jnp.float32),
        in_specs=[vmem] * 6,
        out_specs=vmem,
    )(x_flat, wih_p, whh_p, b_p, wfc_p, bfc_p)
    return out[:B]


def make_params(key, input_size=INPUT_SIZE, hidden=HIDDEN):
    # Deterministic synthetic init (uniform, PyTorch-like scale 1/sqrt(H)).
    k = jax.random.split(key, 6)
    s = 1.0 / jnp.sqrt(hidden)
    w_ih = jax.random.uniform(k[0], (4 * hidden, input_size), jnp.float32, -s, s)
    w_hh = jax.random.uniform(k[1], (4 * hidden, hidden), jnp.float32, -s, s)
    b_ih = jax.random.uniform(k[2], (4 * hidden,), jnp.float32, -s, s)
    b_hh = jax.random.uniform(k[3], (4 * hidden,), jnp.float32, -s, s)
    w_fc = jax.random.uniform(k[4], (1, hidden), jnp.float32, -s, s)
    b_fc = jax.random.uniform(k[5], (1,), jnp.float32, -s, s)
    return (w_ih, w_hh, b_ih, b_hh, w_fc, b_fc)


def reference_forward(x, params):
    # Pure-JAX reference of the PyTorch module semantics.
    w_ih, w_hh, b_ih, b_hh, w_fc, b_fc = params
    B, T, _ = x.shape
    H = w_hh.shape[1]
    h = jnp.zeros((B, H), jnp.float32)
    c = jnp.zeros((B, H), jnp.float32)
    for t in range(T):
        gates = x[:, t, :] @ w_ih.T + b_ih + h @ w_hh.T + b_hh
        i_g = jax.nn.sigmoid(gates[:, 0 * H:1 * H])
        f_g = jax.nn.sigmoid(gates[:, 1 * H:2 * H])
        g_g = jnp.tanh(gates[:, 2 * H:3 * H])
        o_g = jax.nn.sigmoid(gates[:, 3 * H:4 * H])
        c = f_g * c + i_g * g_g
        h = o_g * jnp.tanh(c)
    h = jnp.maximum(h, 0.0)
    return jax.nn.sigmoid(h @ w_fc.T + b_fc)


if __name__ == "__main__":
    key = jax.random.PRNGKey(0)
    k_x, k_p = jax.random.split(key)
    B, T = 4, 8
    x = jax.random.normal(k_x, (B, T, INPUT_SIZE), jnp.float32)
    params = make_params(k_p)
    prepared = prepare_params(params)        # one-time layout prep

    out = jax.block_until_ready(lstm_forward(x, prepared))
    ref = reference_forward(x, params)
    assert out.shape == (B, 1)
    assert jnp.allclose(out, ref, atol=1e-5, rtol=1e-5)
    print("KERNEL_OK")
</pallas_src>

<mosaic_0001>
module attributes {stable_mosaic.version = 11 : i64} {
  func.func @lstm_kernel(%arg0: memref<8x16xf32, #tpu.memory_space<vmem>>, %arg1: memref<2x512xf32, #tpu.memory_space<vmem>>, %arg2: memref<128x512xf32, #tpu.memory_space<vmem>>, %arg3: memref<1x512xf32, #tpu.memory_space<vmem>>, %arg4: memref<1x128xf32, #tpu.memory_space<vmem>>, %arg5: memref<1x1xf32, #tpu.memory_space<vmem>>, %arg6: memref<8x1xf32, #tpu.memory_space<vmem>>) attributes {dimension_semantics = [], scalar_prefetch = 0 : i64, scratch_operands = 0 : i64, tpu.core_type = #tpu.core_type<tc>} {
    %c0 = arith.constant 0 : index
    %c0_0 = arith.constant 0 : index
    %0 = vector.load %arg2[%c0, %c0_0] : memref<128x512xf32, #tpu.memory_space<vmem>>, vector<128x512xf32>
    %c0_1 = arith.constant 0 : index
    %c0_2 = arith.constant 0 : index
    %1 = vector.load %arg3[%c0_1, %c0_2] : memref<1x512xf32, #tpu.memory_space<vmem>>, vector<1x512xf32>
    %c0_3 = arith.constant 0 : index
    %c0_4 = arith.constant 0 : index
    %2 = vector.load %arg1[%c0_3, %c0_4] : memref<2x512xf32, #tpu.memory_space<vmem>>, vector<1x512xf32>
    %c1 = arith.constant 1 : index
    %c0_5 = arith.constant 0 : index
    %3 = vector.load %arg1[%c1, %c0_5] : memref<2x512xf32, #tpu.memory_space<vmem>>, vector<1x512xf32>
    %c0_6 = arith.constant 0 : index
    %c0_7 = arith.constant 0 : index
    %4 = vector.load %arg0[%c0_6, %c0_7] : memref<8x16xf32, #tpu.memory_space<vmem>>, vector<8x16xf32>
    %cst = arith.constant 0.000000e+00 : f32
    %5 = vector.broadcast %cst : f32 to vector<8x128xf32>
    %cst_8 = arith.constant 0.000000e+00 : f32
    %6 = vector.broadcast %cst_8 : f32 to vector<8x128xf32>
    %7 = vector.extract_strided_slice %4 {offsets = [0, 0], sizes = [8, 1], strides = [1, 1]} : vector<8x16xf32> to vector<8x1xf32>
    %8 = vector.extract_strided_slice %4 {offsets = [0, 1], sizes = [8, 1], strides = [1, 1]} : vector<8x16xf32> to vector<8x1xf32>
    %9 = vector.broadcast %7 : vector<8x1xf32> to vector<8x512xf32>
    %10 = vector.broadcast %2 : vector<1x512xf32> to vector<8x512xf32>
    %11 = arith.mulf %9, %10 : vector<8x512xf32>
    %12 = vector.broadcast %1 : vector<1x512xf32> to vector<8x512xf32>
    %13 = arith.addf %12, %11 : vector<8x512xf32>
    %14 = vector.broadcast %8 : vector<8x1xf32> to vector<8x512xf32>
    %15 = vector.broadcast %3 : vector<1x512xf32> to vector<8x512xf32>
    %16 = arith.mulf %14, %15 : vector<8x512xf32>
    %17 = arith.addf %13, %16 : vector<8x512xf32>
    %cst_9 = arith.constant dense<0.000000e+00> : vector<8x512xf32>
    %18 = tpu.matmul %5, %0, %cst_9 {dimension_numbers = #tpu.dot_dimension_numbers<[1], [0], [0], [1], [0, 0, 1, 1], [], []>} : vector<8x128xf32>, vector<128x512xf32>, vector<8x512xf32> -> vector<8x512xf32>
    %19 = arith.addf %17, %18 : vector<8x512xf32>
    %20 = vector.extract_strided_slice %19 {offsets = [0, 0], sizes = [8, 128], strides = [1, 1]} : vector<8x512xf32> to vector<8x128xf32>
    %cst_10 = arith.constant 5.000000e-01 : f32
    %21 = vector.broadcast %cst_10 : f32 to vector<8x128xf32>
    %22 = arith.mulf %21, %20 : vector<8x128xf32>
    %23 = math.tanh %22 : vector<8x128xf32>
    %cst_11 = arith.constant 5.000000e-01 : f32
    %24 = vector.broadcast %cst_11 : f32 to vector<8x128xf32>
    %25 = arith.mulf %24, %23 : vector<8x128xf32>
    %cst_12 = arith.constant 5.000000e-01 : f32
    %26 = vector.broadcast %cst_12 : f32 to vector<8x128xf32>
    %27 = arith.addf %25, %26 : vector<8x128xf32>
    %28 = vector.extract_strided_slice %19 {offsets = [0, 128], sizes = [8, 128], strides = [1, 1]} : vector<8x512xf32> to vector<8x128xf32>
    %cst_13 = arith.constant 5.000000e-01 : f32
    %29 = vector.broadcast %cst_13 : f32 to vector<8x128xf32>
    %30 = arith.mulf %29, %28 : vector<8x128xf32>
    %31 = math.tanh %30 : vector<8x128xf32>
    %cst_14 = arith.constant 5.000000e-01 : f32
    %32 = vector.broadcast %cst_14 : f32 to vector<8x128xf32>
    %33 = arith.mulf %32, %31 : vector<8x128xf32>
    %cst_15 = arith.constant 5.000000e-01 : f32
    %34 = vector.broadcast %cst_15 : f32 to vector<8x128xf32>
    %35 = arith.addf %33, %34 : vector<8x128xf32>
    %36 = vector.extract_strided_slice %19 {offsets = [0, 256], sizes = [8, 128], strides = [1, 1]} : vector<8x512xf32> to vector<8x128xf32>
    %37 = math.tanh %36 : vector<8x128xf32>
    %38 = vector.extract_strided_slice %19 {offsets = [0, 384], sizes = [8, 128], strides = [1, 1]} : vector<8x512xf32> to vector<8x128xf32>
    %cst_16 = arith.constant 5.000000e-01 : f32
    %39 = vector.broadcast %cst_16 : f32 to vector<8x128xf32>
    %40 = arith.mulf %39, %38 : vector<8x128xf32>
    %41 = math.tanh %40 : vector<8x128xf32>
    %cst_17 = arith.constant 5.000000e-01 : f32
    %42 = vector.broadcast %cst_17 : f32 to vector<8x128xf32>
    %43 = arith.mulf %42, %41 : vector<8x128xf32>
    %cst_18 = arith.constant 5.000000e-01 : f32
    %44 = vector.broadcast %cst_18 : f32 to vector<8x128xf32>
    %45 = arith.addf %43, %44 : vector<8x128xf32>
    %46 = arith.mulf %35, %6 : vector<8x128xf32>
    %47 = arith.mulf %27, %37 : vector<8x128xf32>
    %48 = arith.addf %46, %47 : vector<8x128xf32>
    %49 = math.tanh %48 : vector<8x128xf32>
    %50 = arith.mulf %45, %49 : vector<8x128xf32>
    %51 = vector.extract_strided_slice %4 {offsets = [0, 2], sizes = [8, 1], strides = [1, 1]} : vector<8x16xf32> to vector<8x1xf32>
    %52 = vector.extract_strided_slice %4 {offsets = [0, 3], sizes = [8, 1], strides = [1, 1]} : vector<8x16xf32> to vector<8x1xf32>
    %53 = vector.broadcast %51 : vector<8x1xf32> to vector<8x512xf32>
    %54 = vector.broadcast %2 : vector<1x512xf32> to vector<8x512xf32>
    %55 = arith.mulf %53, %54 : vector<8x512xf32>
    %56 = vector.broadcast %1 : vector<1x512xf32> to vector<8x512xf32>
    %57 = arith.addf %56, %55 : vector<8x512xf32>
    %58 = vector.broadcast %52 : vector<8x1xf32> to vector<8x512xf32>
    %59 = vector.broadcast %3 : vector<1x512xf32> to vector<8x512xf32>
    %60 = arith.mulf %58, %59 : vector<8x512xf32>
    %61 = arith.addf %57, %60 : vector<8x512xf32>
    %cst_19 = arith.constant dense<0.000000e+00> : vector<8x512xf32>
    %62 = tpu.matmul %50, %0, %cst_19 {dimension_numbers = #tpu.dot_dimension_numbers<[1], [0], [0], [1], [0, 0, 1, 1], [], []>} : vector<8x128xf32>, vector<128x512xf32>, vector<8x512xf32> -> vector<8x512xf32>
    %63 = arith.addf %61, %62 : vector<8x512xf32>
    %64 = vector.extract_strided_slice %63 {offsets = [0, 0], sizes = [8, 128], strides = [1, 1]} : vector<8x512xf32> to vector<8x128xf32>
    %cst_20 = arith.constant 5.000000e-01 : f32
    %65 = vector.broadcast %cst_20 : f32 to vector<8x128xf32>
    %66 = arith.mulf %65, %64 : vector<8x128xf32>
    %67 = math.tanh %66 : vector<8x128xf32>
    %cst_21 = arith.constant 5.000000e-01 : f32
    %68 = vector.broadcast %cst_21 : f32 to vector<8x128xf32>
    %69 = arith.mulf %68, %67 : vector<8x128xf32>
    %cst_22 = arith.constant 5.000000e-01 : f32
    %70 = vector.broadcast %cst_22 : f32 to vector<8x128xf32>
    %71 = arith.addf %69, %70 : vector<8x128xf32>
    %72 = vector.extract_strided_slice %63 {offsets = [0, 128], sizes = [8, 128], strides = [1, 1]} : vector<8x512xf32> to vector<8x128xf32>
    %cst_23 = arith.constant 5.000000e-01 : f32
    %73 = vector.broadcast %cst_23 : f32 to vector<8x128xf32>
    %74 = arith.mulf %73, %72 : vector<8x128xf32>
    %75 = math.tanh %74 : vector<8x128xf32>
    %cst_24 = arith.constant 5.000000e-01 : f32
    %76 = vector.broadcast %cst_24 : f32 to vector<8x128xf32>
    %77 = arith.mulf %76, %75 : vector<8x128xf32>
    %cst_25 = arith.constant 5.000000e-01 : f32
    %78 = vector.broadcast %cst_25 : f32 to vector<8x128xf32>
    %79 = arith.addf %77, %78 : vector<8x128xf32>
    %80 = vector.extract_strided_slice %63 {offsets = [0, 256], sizes = [8, 128], strides = [1, 1]} : vector<8x512xf32> to vector<8x128xf32>
    %81 = math.tanh %80 : vector<8x128xf32>
    %82 = vector.extract_strided_slice %63 {offsets = [0, 384], sizes = [8, 128], strides = [1, 1]} : vector<8x512xf32> to vector<8x128xf32>
    %cst_26 = arith.constant 5.000000e-01 : f32
    %83 = vector.broadcast %cst_26 : f32 to vector<8x128xf32>
    %84 = arith.mulf %83, %82 : vector<8x128xf32>
    %85 = math.tanh %84 : vector<8x128xf32>
    %cst_27 = arith.constant 5.000000e-01 : f32
    %86 = vector.broadcast %cst_27 : f32 to vector<8x128xf32>
    %87 = arith.mulf %86, %85 : vector<8x128xf32>
    %cst_28 = arith.constant 5.000000e-01 : f32
    %88 = vector.broadcast %cst_28 : f32 to vector<8x128xf32>
    %89 = arith.addf %87, %88 : vector<8x128xf32>
    %90 = arith.mulf %79, %48 : vector<8x128xf32>
    %91 = arith.mulf %71, %81 : vector<8x128xf32>
    %92 = arith.addf %90, %91 : vector<8x128xf32>
    %93 = math.tanh %92 : vector<8x128xf32>
    %94 = arith.mulf %89, %93 : vector<8x128xf32>
    %95 = vector.extract_strided_slice %4 {offsets = [0, 4], sizes = [8, 1], strides = [1, 1]} : vector<8x16xf32> to vector<8x1xf32>
    %96 = vector.extract_strided_slice %4 {offsets = [0, 5], sizes = [8, 1], strides = [1, 1]} : vector<8x16xf32> to vector<8x1xf32>
    %97 = vector.broadcast %95 : vector<8x1xf32> to vector<8x512xf32>
    %98 = vector.broadcast %2 : vector<1x512xf32> to vector<8x512xf32>
    %99 = arith.mulf %97, %98 : vector<8x512xf32>
    %100 = vector.broadcast %1 : vector<1x512xf32> to vector<8x512xf32>
    %101 = arith.addf %100, %99 : vector<8x512xf32>
    %102 = vector.broadcast %96 : vector<8x1xf32> to vector<8x512xf32>
    %103 = vector.broadcast %3 : vector<1x512xf32> to vector<8x512xf32>
    %104 = arith.mulf %102, %103 : vector<8x512xf32>
    %105 = arith.addf %101, %104 : vector<8x512xf32>
    %cst_29 = arith.constant dense<0.000000e+00> : vector<8x512xf32>
    %106 = tpu.matmul %94, %0, %cst_29 {dimension_numbers = #tpu.dot_dimension_numbers<[1], [0], [0], [1], [0, 0, 1, 1], [], []>} : vector<8x128xf32>, vector<128x512xf32>, vector<8x512xf32> -> vector<8x512xf32>
    %107 = arith.addf %105, %106 : vector<8x512xf32>
    %108 = vector.extract_strided_slice %107 {offsets = [0, 0], sizes = [8, 128], strides = [1, 1]} : vector<8x512xf32> to vector<8x128xf32>
    %cst_30 = arith.constant 5.000000e-01 : f32
    %109 = vector.broadcast %cst_30 : f32 to vector<8x128xf32>
    %110 = arith.mulf %109, %108 : vector<8x128xf32>
    %111 = math.tanh %110 : vector<8x128xf32>
    %cst_31 = arith.constant 5.000000e-01 : f32
    %112 = vector.broadcast %cst_31 : f32 to vector<8x128xf32>
    %113 = arith.mulf %112, %111 : vector<8x128xf32>
    %cst_32 = arith.constant 5.000000e-01 : f32
    %114 = vector.broadcast %cst_32 : f32 to vector<8x128xf32>
    %115 = arith.addf %113, %114 : vector<8x128xf32>
    %116 = vector.extract_strided_slice %107 {offsets = [0, 128], sizes = [8, 128], strides = [1, 1]} : vector<8x512xf32> to vector<8x128xf32>
    %cst_33 = arith.constant 5.000000e-01 : f32
    %117 = vector.broadcast %cst_33 : f32 to vector<8x128xf32>
    %118 = arith.mulf %117, %116 : vector<8x128xf32>
    %119 = math.tanh %118 : vector<8x128xf32>
    %cst_34 = arith.constant 5.000000e-01 : f32
    %120 = vector.broadcast %cst_34 : f32 to vector<8x128xf32>
    %121 = arith.mulf %120, %119 : vector<8x128xf32>
    %cst_35 = arith.constant 5.000000e-01 : f32
    %122 = vector.broadcast %cst_35 : f32 to vector<8x128xf32>
    %123 = arith.addf %121, %122 : vector<8x128xf32>
    %124 = vector.extract_strided_slice %107 {offsets = [0, 256], sizes = [8, 128], strides = [1, 1]} : vector<8x512xf32> to vector<8x128xf32>
    %125 = math.tanh %124 : vector<8x128xf32>
    %126 = vector.extract_strided_slice %107 {offsets = [0, 384], sizes = [8, 128], strides = [1, 1]} : vector<8x512xf32> to vector<8x128xf32>
    %cst_36 = arith.constant 5.000000e-01 : f32
    %127 = vector.broadcast %cst_36 : f32 to vector<8x128xf32>
    %128 = arith.mulf %127, %126 : vector<8x128xf32>
    %129 = math.tanh %128 : vector<8x128xf32>
    %cst_37 = arith.constant 5.000000e-01 : f32
    %130 = vector.broadcast %cst_37 : f32 to vector<8x128xf32>
    %131 = arith.mulf %130, %129 : vector<8x128xf32>
    %cst_38 = arith.constant 5.000000e-01 : f32
    %132 = vector.broadcast %cst_38 : f32 to vector<8x128xf32>
    %133 = arith.addf %131, %132 : vector<8x128xf32>
    %134 = arith.mulf %123, %92 : vector<8x128xf32>
    %135 = arith.mulf %115, %125 : vector<8x128xf32>
    %136 = arith.addf %134, %135 : vector<8x128xf32>
    %137 = math.tanh %136 : vector<8x128xf32>
    %138 = arith.mulf %133, %137 : vector<8x128xf32>
    %139 = vector.extract_strided_slice %4 {offsets = [0, 6], sizes = [8, 1], strides = [1, 1]} : vector<8x16xf32> to vector<8x1xf32>
    %140 = vector.extract_strided_slice %4 {offsets = [0, 7], sizes = [8, 1], strides = [1, 1]} : vector<8x16xf32> to vector<8x1xf32>
    %141 = vector.broadcast %139 : vector<8x1xf32> to vector<8x512xf32>
    %142 = vector.broadcast %2 : vector<1x512xf32> to vector<8x512xf32>
    %143 = arith.mulf %141, %142 : vector<8x512xf32>
    %144 = vector.broadcast %1 : vector<1x512xf32> to vector<8x512xf32>
    %145 = arith.addf %144, %143 : vector<8x512xf32>
    %146 = vector.broadcast %140 : vector<8x1xf32> to vector<8x512xf32>
    %147 = vector.broadcast %3 : vector<1x512xf32> to vector<8x512xf32>
    %148 = arith.mulf %146, %147 : vector<8x512xf32>
    %149 = arith.addf %145, %148 : vector<8x512xf32>
    %cst_39 = arith.constant dense<0.000000e+00> : vector<8x512xf32>
    %150 = tpu.matmul %138, %0, %cst_39 {dimension_numbers = #tpu.dot_dimension_numbers<[1], [0], [0], [1], [0, 0, 1, 1], [], []>} : vector<8x128xf32>, vector<128x512xf32>, vector<8x512xf32> -> vector<8x512xf32>
    %151 = arith.addf %149, %150 : vector<8x512xf32>
    %152 = vector.extract_strided_slice %151 {offsets = [0, 0], sizes = [8, 128], strides = [1, 1]} : vector<8x512xf32> to vector<8x128xf32>
    %cst_40 = arith.constant 5.000000e-01 : f32
    %153 = vector.broadcast %cst_40 : f32 to vector<8x128xf32>
    %154 = arith.mulf %153, %152 : vector<8x128xf32>
    %155 = math.tanh %154 : vector<8x128xf32>
    %cst_41 = arith.constant 5.000000e-01 : f32
    %156 = vector.broadcast %cst_41 : f32 to vector<8x128xf32>
    %157 = arith.mulf %156, %155 : vector<8x128xf32>
    %cst_42 = arith.constant 5.000000e-01 : f32
    %158 = vector.broadcast %cst_42 : f32 to vector<8x128xf32>
    %159 = arith.addf %157, %158 : vector<8x128xf32>
    %160 = vector.extract_strided_slice %151 {offsets = [0, 128], sizes = [8, 128], strides = [1, 1]} : vector<8x512xf32> to vector<8x128xf32>
    %cst_43 = arith.constant 5.000000e-01 : f32
    %161 = vector.broadcast %cst_43 : f32 to vector<8x128xf32>
    %162 = arith.mulf %161, %160 : vector<8x128xf32>
    %163 = math.tanh %162 : vector<8x128xf32>
    %cst_44 = arith.constant 5.000000e-01 : f32
    %164 = vector.broadcast %cst_44 : f32 to vector<8x128xf32>
    %165 = arith.mulf %164, %163 : vector<8x128xf32>
    %cst_45 = arith.constant 5.000000e-01 : f32
    %166 = vector.broadcast %cst_45 : f32 to vector<8x128xf32>
    %167 = arith.addf %165, %166 : vector<8x128xf32>
    %168 = vector.extract_strided_slice %151 {offsets = [0, 256], sizes = [8, 128], strides = [1, 1]} : vector<8x512xf32> to vector<8x128xf32>
    %169 = math.tanh %168 : vector<8x128xf32>
    %170 = vector.extract_strided_slice %151 {offsets = [0, 384], sizes = [8, 128], strides = [1, 1]} : vector<8x512xf32> to vector<8x128xf32>
    %cst_46 = arith.constant 5.000000e-01 : f32
    %171 = vector.broadcast %cst_46 : f32 to vector<8x128xf32>
    %172 = arith.mulf %171, %170 : vector<8x128xf32>
    %173 = math.tanh %172 : vector<8x128xf32>
    %cst_47 = arith.constant 5.000000e-01 : f32
    %174 = vector.broadcast %cst_47 : f32 to vector<8x128xf32>
    %175 = arith.mulf %174, %173 : vector<8x128xf32>
    %cst_48 = arith.constant 5.000000e-01 : f32
    %176 = vector.broadcast %cst_48 : f32 to vector<8x128xf32>
    %177 = arith.addf %175, %176 : vector<8x128xf32>
    %178 = arith.mulf %167, %136 : vector<8x128xf32>
    %179 = arith.mulf %159, %169 : vector<8x128xf32>
    %180 = arith.addf %178, %179 : vector<8x128xf32>
    %181 = math.tanh %180 : vector<8x128xf32>
    %182 = arith.mulf %177, %181 : vector<8x128xf32>
    %183 = vector.extract_strided_slice %4 {offsets = [0, 8], sizes = [8, 1], strides = [1, 1]} : vector<8x16xf32> to vector<8x1xf32>
    %184 = vector.extract_strided_slice %4 {offsets = [0, 9], sizes = [8, 1], strides = [1, 1]} : vector<8x16xf32> to vector<8x1xf32>
    %185 = vector.broadcast %183 : vector<8x1xf32> to vector<8x512xf32>
    %186 = vector.broadcast %2 : vector<1x512xf32> to vector<8x512xf32>
    %187 = arith.mulf %185, %186 : vector<8x512xf32>
    %188 = vector.broadcast %1 : vector<1x512xf32> to vector<8x512xf32>
    %189 = arith.addf %188, %187 : vector<8x512xf32>
    %190 = vector.broadcast %184 : vector<8x1xf32> to vector<8x512xf32>
    %191 = vector.broadcast %3 : vector<1x512xf32> to vector<8x512xf32>
    %192 = arith.mulf %190, %191 : vector<8x512xf32>
    %193 = arith.addf %189, %192 : vector<8x512xf32>
    %cst_49 = arith.constant dense<0.000000e+00> : vector<8x512xf32>
    %194 = tpu.matmul %182, %0, %cst_49 {dimension_numbers = #tpu.dot_dimension_numbers<[1], [0], [0], [1], [0, 0, 1, 1], [], []>} : vector<8x128xf32>, vector<128x512xf32>, vector<8x512xf32> -> vector<8x512xf32>
    %195 = arith.addf %193, %194 : vector<8x512xf32>
    %196 = vector.extract_strided_slice %195 {offsets = [0, 0], sizes = [8, 128], strides = [1, 1]} : vector<8x512xf32> to vector<8x128xf32>
    %cst_50 = arith.constant 5.000000e-01 : f32
    %197 = vector.broadcast %cst_50 : f32 to vector<8x128xf32>
    %198 = arith.mulf %197, %196 : vector<8x128xf32>
    %199 = math.tanh %198 : vector<8x128xf32>
    %cst_51 = arith.constant 5.000000e-01 : f32
    %200 = vector.broadcast %cst_51 : f32 to vector<8x128xf32>
    %201 = arith.mulf %200, %199 : vector<8x128xf32>
    %cst_52 = arith.constant 5.000000e-01 : f32
    %202 = vector.broadcast %cst_52 : f32 to vector<8x128xf32>
    %203 = arith.addf %201, %202 : vector<8x128xf32>
    %204 = vector.extract_strided_slice %195 {offsets = [0, 128], sizes = [8, 128], strides = [1, 1]} : vector<8x512xf32> to vector<8x128xf32>
    %cst_53 = arith.constant 5.000000e-01 : f32
    %205 = vector.broadcast %cst_53 : f32 to vector<8x128xf32>
    %206 = arith.mulf %205, %204 : vector<8x128xf32>
    %207 = math.tanh %206 : vector<8x128xf32>
    %cst_54 = arith.constant 5.000000e-01 : f32
    %208 = vector.broadcast %cst_54 : f32 to vector<8x128xf32>
    %209 = arith.mulf %208, %207 : vector<8x128xf32>
    %cst_55 = arith.constant 5.000000e-01 : f32
    %210 = vector.broadcast %cst_55 : f32 to vector<8x128xf32>
    %211 = arith.addf %209, %210 : vector<8x128xf32>
    %212 = vector.extract_strided_slice %195 {offsets = [0, 256], sizes = [8, 128], strides = [1, 1]} : vector<8x512xf32> to vector<8x128xf32>
    %213 = math.tanh %212 : vector<8x128xf32>
    %214 = vector.extract_strided_slice %195 {offsets = [0, 384], sizes = [8, 128], strides = [1, 1]} : vector<8x512xf32> to vector<8x128xf32>
    %cst_56 = arith.constant 5.000000e-01 : f32
    %215 = vector.broadcast %cst_56 : f32 to vector<8x128xf32>
    %216 = arith.mulf %215, %214 : vector<8x128xf32>
    %217 = math.tanh %216 : vector<8x128xf32>
    %cst_57 = arith.constant 5.000000e-01 : f32
    %218 = vector.broadcast %cst_57 : f32 to vector<8x128xf32>
    %219 = arith.mulf %218, %217 : vector<8x128xf32>
    %cst_58 = arith.constant 5.000000e-01 : f32
    %220 = vector.broadcast %cst_58 : f32 to vector<8x128xf32>
    %221 = arith.addf %219, %220 : vector<8x128xf32>
    %222 = arith.mulf %211, %180 : vector<8x128xf32>
    %223 = arith.mulf %203, %213 : vector<8x128xf32>
    %224 = arith.addf %222, %223 : vector<8x128xf32>
    %225 = math.tanh %224 : vector<8x128xf32>
    %226 = arith.mulf %221, %225 : vector<8x128xf32>
    %227 = vector.extract_strided_slice %4 {offsets = [0, 10], sizes = [8, 1], strides = [1, 1]} : vector<8x16xf32> to vector<8x1xf32>
    %228 = vector.extract_strided_slice %4 {offsets = [0, 11], sizes = [8, 1], strides = [1, 1]} : vector<8x16xf32> to vector<8x1xf32>
    %229 = vector.broadcast %227 : vector<8x1xf32> to vector<8x512xf32>
    %230 = vector.broadcast %2 : vector<1x512xf32> to vector<8x512xf32>
    %231 = arith.mulf %229, %230 : vector<8x512xf32>
    %232 = vector.broadcast %1 : vector<1x512xf32> to vector<8x512xf32>
    %233 = arith.addf %232, %231 : vector<8x512xf32>
    %234 = vector.broadcast %228 : vector<8x1xf32> to vector<8x512xf32>
    %235 = vector.broadcast %3 : vector<1x512xf32> to vector<8x512xf32>
    %236 = arith.mulf %234, %235 : vector<8x512xf32>
    %237 = arith.addf %233, %236 : vector<8x512xf32>
    %cst_59 = arith.constant dense<0.000000e+00> : vector<8x512xf32>
    %238 = tpu.matmul %226, %0, %cst_59 {dimension_numbers = #tpu.dot_dimension_numbers<[1], [0], [0], [1], [0, 0, 1, 1], [], []>} : vector<8x128xf32>, vector<128x512xf32>, vector<8x512xf32> -> vector<8x512xf32>
    %239 = arith.addf %237, %238 : vector<8x512xf32>
    %240 = vector.extract_strided_slice %239 {offsets = [0, 0], sizes = [8, 128], strides = [1, 1]} : vector<8x512xf32> to vector<8x128xf32>
    %cst_60 = arith.constant 5.000000e-01 : f32
    %241 = vector.broadcast %cst_60 : f32 to vector<8x128xf32>
    %242 = arith.mulf %241, %240 : vector<8x128xf32>
    %243 = math.tanh %242 : vector<8x128xf32>
    %cst_61 = arith.constant 5.000000e-01 : f32
    %244 = vector.broadcast %cst_61 : f32 to vector<8x128xf32>
    %245 = arith.mulf %244, %243 : vector<8x128xf32>
    %cst_62 = arith.constant 5.000000e-01 : f32
    %246 = vector.broadcast %cst_62 : f32 to vector<8x128xf32>
    %247 = arith.addf %245, %246 : vector<8x128xf32>
    %248 = vector.extract_strided_slice %239 {offsets = [0, 128], sizes = [8, 128], strides = [1, 1]} : vector<8x512xf32> to vector<8x128xf32>
    %cst_63 = arith.constant 5.000000e-01 : f32
    %249 = vector.broadcast %cst_63 : f32 to vector<8x128xf32>
    %250 = arith.mulf %249, %248 : vector<8x128xf32>
    %251 = math.tanh %250 : vector<8x128xf32>
    %cst_64 = arith.constant 5.000000e-01 : f32
    %252 = vector.broadcast %cst_64 : f32 to vector<8x128xf32>
    %253 = arith.mulf %252, %251 : vector<8x128xf32>
    %cst_65 = arith.constant 5.000000e-01 : f32
    %254 = vector.broadcast %cst_65 : f32 to vector<8x128xf32>
    %255 = arith.addf %253, %254 : vector<8x128xf32>
    %256 = vector.extract_strided_slice %239 {offsets = [0, 256], sizes = [8, 128], strides = [1, 1]} : vector<8x512xf32> to vector<8x128xf32>
    %257 = math.tanh %256 : vector<8x128xf32>
    %258 = vector.extract_strided_slice %239 {offsets = [0, 384], sizes = [8, 128], strides = [1, 1]} : vector<8x512xf32> to vector<8x128xf32>
    %cst_66 = arith.constant 5.000000e-01 : f32
    %259 = vector.broadcast %cst_66 : f32 to vector<8x128xf32>
    %260 = arith.mulf %259, %258 : vector<8x128xf32>
    %261 = math.tanh %260 : vector<8x128xf32>
    %cst_67 = arith.constant 5.000000e-01 : f32
    %262 = vector.broadcast %cst_67 : f32 to vector<8x128xf32>
    %263 = arith.mulf %262, %261 : vector<8x128xf32>
    %cst_68 = arith.constant 5.000000e-01 : f32
    %264 = vector.broadcast %cst_68 : f32 to vector<8x128xf32>
    %265 = arith.addf %263, %264 : vector<8x128xf32>
    %266 = arith.mulf %255, %224 : vector<8x128xf32>
    %267 = arith.mulf %247, %257 : vector<8x128xf32>
    %268 = arith.addf %266, %267 : vector<8x128xf32>
    %269 = math.tanh %268 : vector<8x128xf32>
    %270 = arith.mulf %265, %269 : vector<8x128xf32>
    %271 = vector.extract_strided_slice %4 {offsets = [0, 12], sizes = [8, 1], strides = [1, 1]} : vector<8x16xf32> to vector<8x1xf32>
    %272 = vector.extract_strided_slice %4 {offsets = [0, 13], sizes = [8, 1], strides = [1, 1]} : vector<8x16xf32> to vector<8x1xf32>
    %273 = vector.broadcast %271 : vector<8x1xf32> to vector<8x512xf32>
    %274 = vector.broadcast %2 : vector<1x512xf32> to vector<8x512xf32>
    %275 = arith.mulf %273, %274 : vector<8x512xf32>
    %276 = vector.broadcast %1 : vector<1x512xf32> to vector<8x512xf32>
    %277 = arith.addf %276, %275 : vector<8x512xf32>
    %278 = vector.broadcast %272 : vector<8x1xf32> to vector<8x512xf32>
    %279 = vector.broadcast %3 : vector<1x512xf32> to vector<8x512xf32>
    %280 = arith.mulf %278, %279 : vector<8x512xf32>
    %281 = arith.addf %277, %280 : vector<8x512xf32>
    %cst_69 = arith.constant dense<0.000000e+00> : vector<8x512xf32>
    %282 = tpu.matmul %270, %0, %cst_69 {dimension_numbers = #tpu.dot_dimension_numbers<[1], [0], [0], [1], [0, 0, 1, 1], [], []>} : vector<8x128xf32>, vector<128x512xf32>, vector<8x512xf32> -> vector<8x512xf32>
    %283 = arith.addf %281, %282 : vector<8x512xf32>
    %284 = vector.extract_strided_slice %283 {offsets = [0, 0], sizes = [8, 128], strides = [1, 1]} : vector<8x512xf32> to vector<8x128xf32>
    %cst_70 = arith.constant 5.000000e-01 : f32
    %285 = vector.broadcast %cst_70 : f32 to vector<8x128xf32>
    %286 = arith.mulf %285, %284 : vector<8x128xf32>
    %287 = math.tanh %286 : vector<8x128xf32>
    %cst_71 = arith.constant 5.000000e-01 : f32
    %288 = vector.broadcast %cst_71 : f32 to vector<8x128xf32>
    %289 = arith.mulf %288, %287 : vector<8x128xf32>
    %cst_72 = arith.constant 5.000000e-01 : f32
    %290 = vector.broadcast %cst_72 : f32 to vector<8x128xf32>
    %291 = arith.addf %289, %290 : vector<8x128xf32>
    %292 = vector.extract_strided_slice %283 {offsets = [0, 128], sizes = [8, 128], strides = [1, 1]} : vector<8x512xf32> to vector<8x128xf32>
    %cst_73 = arith.constant 5.000000e-01 : f32
    %293 = vector.broadcast %cst_73 : f32 to vector<8x128xf32>
    %294 = arith.mulf %293, %292 : vector<8x128xf32>
    %295 = math.tanh %294 : vector<8x128xf32>
    %cst_74 = arith.constant 5.000000e-01 : f32
    %296 = vector.broadcast %cst_74 : f32 to vector<8x128xf32>
    %297 = arith.mulf %296, %295 : vector<8x128xf32>
    %cst_75 = arith.constant 5.000000e-01 : f32
    %298 = vector.broadcast %cst_75 : f32 to vector<8x128xf32>
    %299 = arith.addf %297, %298 : vector<8x128xf32>
    %300 = vector.extract_strided_slice %283 {offsets = [0, 256], sizes = [8, 128], strides = [1, 1]} : vector<8x512xf32> to vector<8x128xf32>
    %301 = math.tanh %300 : vector<8x128xf32>
    %302 = vector.extract_strided_slice %283 {offsets = [0, 384], sizes = [8, 128], strides = [1, 1]} : vector<8x512xf32> to vector<8x128xf32>
    %cst_76 = arith.constant 5.000000e-01 : f32
    %303 = vector.broadcast %cst_76 : f32 to vector<8x128xf32>
    %304 = arith.mulf %303, %302 : vector<8x128xf32>
    %305 = math.tanh %304 : vector<8x128xf32>
    %cst_77 = arith.constant 5.000000e-01 : f32
    %306 = vector.broadcast %cst_77 : f32 to vector<8x128xf32>
    %307 = arith.mulf %306, %305 : vector<8x128xf32>
    %cst_78 = arith.constant 5.000000e-01 : f32
    %308 = vector.broadcast %cst_78 : f32 to vector<8x128xf32>
    %309 = arith.addf %307, %308 : vector<8x128xf32>
    %310 = arith.mulf %299, %268 : vector<8x128xf32>
    %311 = arith.mulf %291, %301 : vector<8x128xf32>
    %312 = arith.addf %310, %311 : vector<8x128xf32>
    %313 = math.tanh %312 : vector<8x128xf32>
    %314 = arith.mulf %309, %313 : vector<8x128xf32>
    %315 = vector.extract_strided_slice %4 {offsets = [0, 14], sizes = [8, 1], strides = [1, 1]} : vector<8x16xf32> to vector<8x1xf32>
    %316 = vector.extract_strided_slice %4 {offsets = [0, 15], sizes = [8, 1], strides = [1, 1]} : vector<8x16xf32> to vector<8x1xf32>
    %317 = vector.broadcast %315 : vector<8x1xf32> to vector<8x512xf32>
    %318 = vector.broadcast %2 : vector<1x512xf32> to vector<8x512xf32>
    %319 = arith.mulf %317, %318 : vector<8x512xf32>
    %320 = vector.broadcast %1 : vector<1x512xf32> to vector<8x512xf32>
    %321 = arith.addf %320, %319 : vector<8x512xf32>
    %322 = vector.broadcast %316 : vector<8x1xf32> to vector<8x512xf32>
    %323 = vector.broadcast %3 : vector<1x512xf32> to vector<8x512xf32>
    %324 = arith.mulf %322, %323 : vector<8x512xf32>
    %325 = arith.addf %321, %324 : vector<8x512xf32>
    %cst_79 = arith.constant dense<0.000000e+00> : vector<8x512xf32>
    %326 = tpu.matmul %314, %0, %cst_79 {dimension_numbers = #tpu.dot_dimension_numbers<[1], [0], [0], [1], [0, 0, 1, 1], [], []>} : vector<8x128xf32>, vector<128x512xf32>, vector<8x512xf32> -> vector<8x512xf32>
    %327 = arith.addf %325, %326 : vector<8x512xf32>
    %328 = vector.extract_strided_slice %327 {offsets = [0, 0], sizes = [8, 128], strides = [1, 1]} : vector<8x512xf32> to vector<8x128xf32>
    %cst_80 = arith.constant 5.000000e-01 : f32
    %329 = vector.broadcast %cst_80 : f32 to vector<8x128xf32>
    %330 = arith.mulf %329, %328 : vector<8x128xf32>
    %331 = math.tanh %330 : vector<8x128xf32>
    %cst_81 = arith.constant 5.000000e-01 : f32
    %332 = vector.broadcast %cst_81 : f32 to vector<8x128xf32>
    %333 = arith.mulf %332, %331 : vector<8x128xf32>
    %cst_82 = arith.constant 5.000000e-01 : f32
    %334 = vector.broadcast %cst_82 : f32 to vector<8x128xf32>
    %335 = arith.addf %333, %334 : vector<8x128xf32>
    %336 = vector.extract_strided_slice %327 {offsets = [0, 128], sizes = [8, 128], strides = [1, 1]} : vector<8x512xf32> to vector<8x128xf32>
    %cst_83 = arith.constant 5.000000e-01 : f32
    %337 = vector.broadcast %cst_83 : f32 to vector<8x128xf32>
    %338 = arith.mulf %337, %336 : vector<8x128xf32>
    %339 = math.tanh %338 : vector<8x128xf32>
    %cst_84 = arith.constant 5.000000e-01 : f32
    %340 = vector.broadcast %cst_84 : f32 to vector<8x128xf32>
    %341 = arith.mulf %340, %339 : vector<8x128xf32>
    %cst_85 = arith.constant 5.000000e-01 : f32
    %342 = vector.broadcast %cst_85 : f32 to vector<8x128xf32>
    %343 = arith.addf %341, %342 : vector<8x128xf32>
    %344 = vector.extract_strided_slice %327 {offsets = [0, 256], sizes = [8, 128], strides = [1, 1]} : vector<8x512xf32> to vector<8x128xf32>
    %345 = math.tanh %344 : vector<8x128xf32>
    %346 = vector.extract_strided_slice %327 {offsets = [0, 384], sizes = [8, 128], strides = [1, 1]} : vector<8x512xf32> to vector<8x128xf32>
    %cst_86 = arith.constant 5.000000e-01 : f32
    %347 = vector.broadcast %cst_86 : f32 to vector<8x128xf32>
    %348 = arith.mulf %347, %346 : vector<8x128xf32>
    %349 = math.tanh %348 : vector<8x128xf32>
    %cst_87 = arith.constant 5.000000e-01 : f32
    %350 = vector.broadcast %cst_87 : f32 to vector<8x128xf32>
    %351 = arith.mulf %350, %349 : vector<8x128xf32>
    %cst_88 = arith.constant 5.000000e-01 : f32
    %352 = vector.broadcast %cst_88 : f32 to vector<8x128xf32>
    %353 = arith.addf %351, %352 : vector<8x128xf32>
    %354 = arith.mulf %343, %312 : vector<8x128xf32>
    %355 = arith.mulf %335, %345 : vector<8x128xf32>
    %356 = arith.addf %354, %355 : vector<8x128xf32>
    %357 = math.tanh %356 : vector<8x128xf32>
    %358 = arith.mulf %353, %357 : vector<8x128xf32>
    %cst_89 = arith.constant 0.000000e+00 : f32
    %359 = vector.broadcast %cst_89 : f32 to vector<8x128xf32>
    %360 = arith.maximumf %358, %359 : vector<8x128xf32>
    %c0_90 = arith.constant 0 : index
    %c0_91 = arith.constant 0 : index
    %361 = vector.load %arg4[%c0_90, %c0_91] : memref<1x128xf32, #tpu.memory_space<vmem>>, vector<1x128xf32>
    %362 = vector.broadcast %361 : vector<1x128xf32> to vector<8x128xf32>
    %363 = arith.mulf %360, %362 : vector<8x128xf32>
    %cst_92 = arith.constant dense<0.000000e+00> : vector<8xf32>
    %364 = vector.multi_reduction <add>, %363, %cst_92 [1] : vector<8x128xf32> to vector<8xf32>
    %365 = vector.shape_cast %364 : vector<8xf32> to vector<8x1xf32>
    %c0_93 = arith.constant 0 : index
    %c0_94 = arith.constant 0 : index
    %366 = vector.load %arg5[%c0_93, %c0_94] : memref<1x1xf32, #tpu.memory_space<vmem>>, vector<1x1xf32>
    %367 = vector.broadcast %366 : vector<1x1xf32> to vector<8x1xf32>
    %368 = arith.addf %365, %367 : vector<8x1xf32>
    %cst_95 = arith.constant 5.000000e-01 : f32
    %369 = vector.broadcast %cst_95 : f32 to vector<8x1xf32>
    %370 = arith.mulf %369, %368 : vector<8x1xf32>
    %371 = math.tanh %370 : vector<8x1xf32>
    %cst_96 = arith.constant 5.000000e-01 : f32
    %372 = vector.broadcast %cst_96 : f32 to vector<8x1xf32>
    %373 = arith.mulf %372, %371 : vector<8x1xf32>
    %cst_97 = arith.constant 5.000000e-01 : f32
    %374 = vector.broadcast %cst_97 : f32 to vector<8x1xf32>
    %375 = arith.addf %373, %374 : vector<8x1xf32>
    %c0_98 = arith.constant 0 : index
    %c0_99 = arith.constant 0 : index
    %376 = vector.load %arg6[%c0_98, %c0_99] : memref<8x1xf32, #tpu.memory_space<vmem>>, vector<8x1xf32>
    tpu.vector_store %arg6[%c0_98, %c0_99], %375 {strides = array<i32>} : memref<8x1xf32, #tpu.memory_space<vmem>>, vector<8x1xf32>,
    return
  }
}

</mosaic_0001>

<llo_original>
// kernel: tpu_custom_call.1
$region0: #{tpu_custom_call.1}
  #allocation0 [shape = 'u32[]', space=smem, size = 0x4, offset = 0x4, fixed_abs, tag = 'smem constant byte address 0x4 - core index']
  #allocation1 [shape = 'u32[72,128]{1,0:T(1,128)}', space=vmem, size = 0x9000, scoped, tag = 'internal scratch']
  #allocation2 [shape = 'f32[1,1]{1,0:T(1,128)S(1)}', space=vmem, size = 0x200, scoped, tag = 'scoped memory for tpu_custom_call.1']
  %s0 = inlined_call_operand.hbm [shape: f32[8,16], index: 0, kind: input, shape index: {}]
  %s1 = inlined_call_operand.hbm [shape: f32[2,512], index: 1, kind: input, shape index: {}]
  %s2 = inlined_call_operand.hbm [shape: f32[128,512], index: 2, kind: input, shape index: {}]
  %s3 = inlined_call_operand.vmem [shape: f32[1,512], index: 3, kind: input, shape index: {}]
  %s4 = inlined_call_operand.vmem [shape: f32[1,128], index: 4, kind: input, shape index: {}]
  %s5 = inlined_call_operand.<no memory space> [shape: f32[1,1], index: 5, kind: input, shape index: {}]
  %s6 = inlined_call_operand.vmem [shape: f32[8,1], index: 6, kind: output, shape index: {}]
  %s7 = sld [smem:[#allocation0]]
  $region46: #{tpu_custom_call.1} parent=0
    _
  %s9 = ssub.s32 1, %s7
  %s10 = scalar_select 0, %s9, %s7
  %v11 = vstv %s5
  %12 = vst [vmem:[#allocation2] sm:$0x1] %v11
  $region1: #{tpu_custom_call.1} parent=0
    #allocation3 [shape = 'u8[4096]{0}', space=vmem, size = 0x1000, scoped, tag = 'input window, operand 0, single buffered']
    #allocation4 [shape = 's32[1]{0}', space=sflag, size = 0x4, scoped, tag = 'scoped memory for tpu_custom_call.1']
    #allocation5 [shape = 'u8[4096]{0}', space=vmem, size = 0x1000, scoped, tag = 'input window, operand 1, single buffered']
    #allocation6 [shape = 's32[1]{0}', space=sflag, size = 0x4, scoped, tag = 'scoped memory for tpu_custom_call.1']
    #allocation7 [shape = 'u8[262144]{0}', space=vmem, size = 0x40000, scoped, tag = 'input window, operand 2, single buffered']
    %13 = vsyncpa [#allocation4], 0
    %14 = vsyncpa [#allocation6], 0
    // Predicated region
    $region2: #{tpu_custom_call.1} parent=1 // pred_check
      _
    $region3: #{tpu_custom_call.1} parent=1 // pred_check_branch
      %16 = sbr.rel (0) target = $region5
    $region4: #{tpu_custom_call.1} parent=1 // pred_region
      %18 = vsyncadd [#allocation4], 0
      %s20 = sshll.u32 %s0, 4
      %s21 = int_to_ptr.hbm [resolvable:$true] %s20
      %s22 = sshll.u32 [#allocation3], 4
      %s23 = int_to_ptr.vmem [resolvable:$true] %s22
      %25 = dma.hbm_to_vmem [thread:$0]  %s21, 128, %s23, [#allocation4]
    $region5: #{tpu_custom_call.1} parent=1 // pred_fallthru
      _
    // Predicated region
    $region6: #{tpu_custom_call.1} parent=1 // pred_check
      _
    $region7: #{tpu_custom_call.1} parent=1 // pred_check_branch
      %27 = sbr.rel (0) target = $region9
    $region8: #{tpu_custom_call.1} parent=1 // pred_region
      %29 = vsyncadd [#allocation6], 0
      %s31 = sshll.u32 %s1, 4
      %s32 = int_to_ptr.hbm [resolvable:$true] %s31
      %s33 = sshll.u32 [#allocation5], 4
      %s34 = int_to_ptr.vmem [resolvable:$true] %s33
      %36 = dma.hbm_to_vmem [thread:$0]  %s32, 128, %s34, [#allocation6]
    $region9: #{tpu_custom_call.1} parent=1 // pred_fallthru
      _
    // Predicated region
    $region10: #{tpu_custom_call.1} parent=1 // pred_check
      _
    $region11: #{tpu_custom_call.1} parent=1 // pred_check_branch
      %38 = sbr.rel (0) target = $region13
    $region12: #{tpu_custom_call.1} parent=1 // pred_region
      %40 = vsyncadd [#allocation6], 0
      %s41 = sshll.u32 %s2, 4
      %s42 = int_to_ptr.hbm [resolvable:$true] %s41
      %s43 = sshll.u32 [#allocation7], 4
      %s44 = int_to_ptr.vmem [resolvable:$true] %s43
      %49 = dma.hbm_to_vmem [thread:$0]  %s42, 8192, %s44, [#allocation6], 512, 512, 32
    $region13: #{tpu_custom_call.1} parent=1 // pred_fallthru
      _
    // Predicated region
    $region14: #{tpu_custom_call.1} parent=1 // pred_check
      _
    $region15: #{tpu_custom_call.1} parent=1 // pred_check_branch
      %51 = sbr.rel (0) target = $region17
    $region16: #{tpu_custom_call.1} parent=1 // pred_region
      _
    $region17: #{tpu_custom_call.1} parent=1 // pred_fallthru
      _
    // Predicated region
    $region18: #{tpu_custom_call.1} parent=1 // pred_check
      _
    $region19: #{tpu_custom_call.1} parent=1 // pred_check_branch
      %53 = sbr.rel (0) target = $region21
    $region20: #{tpu_custom_call.1} parent=1 // pred_region
      _
    $region21: #{tpu_custom_call.1} parent=1 // pred_fallthru
      _
    // Predicated region
    $region22: #{tpu_custom_call.1} parent=1 // pred_check
      _
    $region23: #{tpu_custom_call.1} parent=1 // pred_check_branch
      %55 = sbr.rel (0) target = $region25
    $region24: #{tpu_custom_call.1} parent=1 // pred_region
      _
    $region25: #{tpu_custom_call.1} parent=1 // pred_fallthru
      _
    // Predicated region
    $region26: #{tpu_custom_call.1} parent=1 // pred_check
      _
    $region27: #{tpu_custom_call.1} parent=1 // pred_check_branch
      %57 = sbr.rel (0) target = $region29
    $region28: #{tpu_custom_call.1} parent=1 // pred_region
      %59 = dma.done [#allocation4], 128
    $region29: #{tpu_custom_call.1} parent=1 // pred_fallthru
      _
    // Predicated region
    $region30: #{tpu_custom_call.1} parent=1 // pred_check
      _
    $region31: #{tpu_custom_call.1} parent=1 // pred_check_branch
      %61 = sbr.rel (0) target = $region33
    $region32: #{tpu_custom_call.1} parent=1 // pred_region
      %63 = dma.done [#allocation6], 128
    $region33: #{tpu_custom_call.1} parent=1 // pred_fallthru
      _
    // Predicated region
    $region34: #{tpu_custom_call.1} parent=1 // pred_check
      _
    $region35: #{tpu_custom_call.1} parent=1 // pred_check_branch
      %65 = sbr.rel (0) target = $region37
    $region36: #{tpu_custom_call.1} parent=1 // pred_region
      %67 = dma.done [#allocation6], 8192
    $region37: #{tpu_custom_call.1} parent=1 // pred_fallthru
      _
    %v68 = vld [vmem:[#allocation7] sm:$0xff]
    %v69 = vld [vmem:[#allocation7 + $0x8] sm:$0xff]
    %v70 = vld [vmem:[#allocation7 + $0x10] sm:$0xff]
    %v71 = vld [vmem:[#allocation7 + $0x18] sm:$0xff]
    %v72 = vld [vmem:[#allocation7 + $0x20] sm:$0xff]
    %v73 = vld [vmem:[#allocation7 + $0x28] sm:$0xff]
    %v74 = vld [vmem:[#allocation7 + $0x30] sm:$0xff]
    %v75 = vld [vmem:[#allocation7 + $0x38] sm:$0xff]
    %v76 = vld [vmem:[#allocation7 + $0x40] sm:$0xff]
    %v77 = vld [vmem:[#allocation7 + $0x48] sm:$0xff]
    %v78 = vld [vmem:[#allocation7 + $0x50] sm:$0xff]
    %v79 = vld [vmem:[#allocation7 + $0x58] sm:$0xff]
    %v80 = vld [vmem:[#allocation7 + $0x60] sm:$0xff]
    %v81 = vld [vmem:[#allocation7 + $0x68] sm:$0xff]
    %v82 = vld [vmem:[#allocation7 + $0x70] sm:$0xff]
    %v83 = vld [vmem:[#allocation7 + $0x78] sm:$0xff]
    %v84 = vld [vmem:[#allocation7 + $0x80] sm:$0xff]
    %v85 = vld [vmem:[#allocation7 + $0x88] sm:$0xff]
    %v86 = vld [vmem:[#allocation7 + $0x90] sm:$0xff]
    %v87 = vld [vmem:[#allocation7 + $0x98] sm:$0xff]
    %v88 = vld [vmem:[#allocation7 + $0xa0] sm:$0xff]
    %v89 = vld [vmem:[#allocation7 + $0xa8] sm:$0xff]
    %v90 = vld [vmem:[#allocation7 + $0xb0] sm:$0xff]
    %v91 = vld [vmem:[#allocation7 + $0xb8] sm:$0xff]
    %v92 = vld [vmem:[#allocation7 + $0xc0] sm:$0xff]
    %v93 = vld [vmem:[#allocation7 + $0xc8] sm:$0xff]
    %v94 = vld [vmem:[#allocation7 + $0xd0] sm:$0xff]
    %v95 = vld [vmem:[#allocation7 + $0xd8] sm:$0xff]
    %v96 = vld [vmem:[#allocation7 + $0xe0] sm:$0xff]
    %v97 = vld [vmem:[#allocation7 + $0xe8] sm:$0xff]
    %v98 = vld [vmem:[#allocation7 + $0xf0] sm:$0xff]
    %v99 = vld [vmem:[#allocation7 + $0xf8] sm:$0xff]
    %v100 = vld [vmem:[#allocation7 + $0x100] sm:$0xff]
    %v101 = vld [vmem:[#allocation7 + $0x108] sm:$0xff]
    %v102 = vld [vmem:[#allocation7 + $0x110] sm:$0xff]
    %v103 = vld [vmem:[#allocation7 + $0x118] sm:$0xff]
    %v104 = vld [vmem:[#allocation7 + $0x120] sm:$0xff]
    %v105 = vld [vmem:[#allocation7 + $0x128] sm:$0xff]
    %v106 = vld [vmem:[#allocation7 + $0x130] sm:$0xff]
    %v107 = vld [vmem:[#allocation7 + $0x138] sm:$0xff]
    %v108 = vld [vmem:[#allocation7 + $0x140] sm:$0xff]
    %v109 = vld [vmem:[#allocation7 + $0x148] sm:$0xff]
    %v110 = vld [vmem:[#allocation7 + $0x150] sm:$0xff]
    %v111 = vld [vmem:[#allocation7 + $0x158] sm:$0xff]
    %v112 = vld [vmem:[#allocation7 + $0x160] sm:$0xff]
    %v113 = vld [vmem:[#allocation7 + $0x168] sm:$0xff]
    %v114 = vld [vmem:[#allocation7 + $0x170] sm:$0xff]
    %v115 = vld [vmem:[#allocation7 + $0x178] sm:$0xff]
    %v116 = vld [vmem:[#allocation7 + $0x180] sm:$0xff]
    %v117 = vld [vmem:[#allocation7 + $0x188] sm:$0xff]
    %v118 = vld [vmem:[#allocation7 + $0x190] sm:$0xff]
    %v119 = vld [vmem:[#allocation7 + $0x198] sm:$0xff]
    %v120 = vld [vmem:[#allocation7 + $0x1a0] sm:$0xff]
    %v121 = vld [vmem:[#allocation7 + $0x1a8] sm:$0xff]
    %v122 = vld [vmem:[#allocation7 + $0x1b0] sm:$0xff]
    %v123 = vld [vmem:[#allocation7 + $0x1b8] sm:$0xff]
    %v124 = vld [vmem:[#allocation7 + $0x1c0] sm:$0xff]
    %v125 = vld [vmem:[#allocation7 + $0x1c8] sm:$0xff]
    %v126 = vld [vmem:[#allocation7 + $0x1d0] sm:$0xff]
    %v127 = vld [vmem:[#allocation7 + $0x1d8] sm:$0xff]
    %v128 = vld [vmem:[#allocation7 + $0x1e0] sm:$0xff]
    %v129 = vld [vmem:[#allocation7 + $0x1e8] sm:$0xff]
    %v130 = vld [vmem:[#allocation7 + $0x1f0] sm:$0xff]
    %v131 = vld [vmem:[#allocation7 + $0x1f8] sm:$0xff]
    %v132 = vld [vmem:[%s3] sm:$0xf]
    %v133 = vld [vmem:[#allocation5] ss:$2 sm:$0xf]
    %s134 = scalar_lea.vmem [#allocation5], 1
    %v135 = vld [vmem:[%s134] ss:$2 sm:$0xf]
    %v136 = vld [vmem:[#allocation3] sm:$0xff]
    %138 = vset.pattern.permute.xlu0 0
    %139 = vperm.xlu0 %138, %v136
    %v140 = vpop.permute.xlu0 %139
    %v143 = vperm.slane %v133, 0
    %v144 = vperm.slane %v133, 1
    %v145 = vperm.slane %v133, 2
    %v146 = vperm.slane %v133, 3
    %v151 = vmul.f32 %v140, %v143
    %v152 = vmul.f32 %v140, %v144
    %v153 = vmul.f32 %v140, %v145
    %v154 = vmul.f32 %v140, %v146
    %v156 = vperm.slane %v132, 0
    %v157 = vperm.slane %v132, 1
    %v158 = vperm.slane %v132, 2
    %v159 = vperm.slane %v132, 3
    %v164 = vadd.f32 %v156, %v151
    %v165 = vadd.f32 %v157, %v152
    %v166 = vadd.f32 %v158, %v153
    %v167 = vadd.f32 %v159, %v154
    %168 = vset.pattern.permute.xlu0 1
    %169 = vperm.xlu0 %168, %v136
    %v170 = vpop.permute.xlu0 %169
    %v173 = vperm.slane %v135, 0
    %v174 = vperm.slane %v135, 1
    %v175 = vperm.slane %v135, 2
    %v176 = vperm.slane %v135, 3
    %v181 = vmul.f32 %v170, %v173
    %v182 = vmul.f32 %v170, %v174
    %v183 = vmul.f32 %v170, %v175
    %v184 = vmul.f32 %v170, %v176
    %v185 = vadd.f32 %v164, %v181
    %v186 = vadd.f32 %v165, %v182
    %v187 = vadd.f32 %v166, %v183
    %v188 = vadd.f32 %v167, %v184
    %189 = vmatpush.msra.mxu0 %v128
    %190 = vmatpush.msra.mxu0 %v124
    %191 = vmatpush.msra.mxu0 %v120
    %192 = vmatpush.msra.mxu0 %v116
    %193 = vmatpush.msra.mxu0 %v112
    %194 = vmatpush.msra.mxu0 %v108
    %195 = vmatpush.msra.mxu0 %v104
    %196 = vmatpush.msra.mxu0 %v100
    %197 = vmatpush.msra.mxu0 %v96
    %198 = vmatpush.msra.mxu0 %v92
    %199 = vmatpush.msra.mxu0 %v88
    %200 = vmatpush.msra.mxu0 %v84
    %201 = vmatpush.msra.mxu0 %v80
    %202 = vmatpush.msra.mxu0 %v76
    %203 = vmatpush.msra.mxu0 %v72
    %204 = vmatpush.msra.mxu0 %v68
    %205 = vmatmul.f32.gmra.mxu0 0.0
    %v206 = vpop.f32.mrf.mxu0
    %v207 = vadd.f32 0.0, %v206
    %208 = vdwg.mxu0
    %209 = vmatpush.msra.mxu0 %v129
    %210 = vmatpush.msra.mxu0 %v125
    %211 = vmatpush.msra.mxu0 %v121
    %212 = vmatpush.msra.mxu0 %v117
    %213 = vmatpush.msra.mxu0 %v113
    %214 = vmatpush.msra.mxu0 %v109
    %215 = vmatpush.msra.mxu0 %v105
    %216 = vmatpush.msra.mxu0 %v101
    %217 = vmatpush.msra.mxu0 %v97
    %218 = vmatpush.msra.mxu0 %v93
    %219 = vmatpush.msra.mxu0 %v89
    %220 = vmatpush.msra.mxu0 %v85
    %221 = vmatpush.msra.mxu0 %v81
    %222 = vmatpush.msra.mxu0 %v77
    %223 = vmatpush.msra.mxu0 %v73
    %224 = vmatpush.msra.mxu0 %v69
    %225 = vmatmul.f32.gmra.mxu0 0.0
    %v226 = vpop.f32.mrf.mxu0
    %v227 = vadd.f32 0.0, %v226
    %228 = vdwg.mxu0
    %229 = vmatpush.msra.mxu0 %v130
    %230 = vmatpush.msra.mxu0 %v126
    %231 = vmatpush.msra.mxu0 %v122
    %232 = vmatpush.msra.mxu0 %v118
    %233 = vmatpush.msra.mxu0 %v114
    %234 = vmatpush.msra.mxu0 %v110
    %235 = vmatpush.msra.mxu0 %v106
    %236 = vmatpush.msra.mxu0 %v102
    %237 = vmatpush.msra.mxu0 %v98
    %238 = vmatpush.msra.mxu0 %v94
    %239 = vmatpush.msra.mxu0 %v90
    %240 = vmatpush.msra.mxu0 %v86
    %241 = vmatpush.msra.mxu0 %v82
    %242 = vmatpush.msra.mxu0 %v78
    %243 = vmatpush.msra.mxu0 %v74
    %244 = vmatpush.msra.mxu0 %v70
    %245 = vmatmul.f32.gmra.mxu0 0.0
    %v246 = vpop.f32.mrf.mxu0
    %v247 = vadd.f32 0.0, %v246
    %248 = vdwg.mxu0
    %249 = vmatpush.msra.mxu0 %v131
    %250 = vmatpush.msra.mxu0 %v127
    %251 = vmatpush.msra.mxu0 %v123
    %252 = vmatpush.msra.mxu0 %v119
    %253 = vmatpush.msra.mxu0 %v115
    %254 = vmatpush.msra.mxu0 %v111
    %255 = vmatpush.msra.mxu0 %v107
    %256 = vmatpush.msra.mxu0 %v103
    %257 = vmatpush.msra.mxu0 %v99
    %258 = vmatpush.msra.mxu0 %v95
    %259 = vmatpush.msra.mxu0 %v91
    %260 = vmatpush.msra.mxu0 %v87
    %261 = vmatpush.msra.mxu0 %v83
    %262 = vmatpush.msra.mxu0 %v79
    %263 = vmatpush.msra.mxu0 %v75
    %264 = vmatpush.msra.mxu0 %v71
    %265 = vmatmul.f32.gmra.mxu0 0.0
    %v266 = vpop.f32.mrf.mxu0
    %v267 = vadd.f32 0.0, %v266
    %268 = vdwg.mxu0
    %v269 = vadd.f32 %v185, %v207
    %v270 = vadd.f32 %v186, %v227
    %v271 = vadd.f32 %v187, %v247
    %v272 = vadd.f32 %v188, %v267
    %v273 = vmul.f32 %v269, 0.5
    %v274 = vtanh.pop %v273
    %v275 = vmul.f32 %v274, 0.5
    %v276 = vadd.f32 %v275, 0.5
    %v277 = vmul.f32 %v270, 0.5
    %v278 = vtanh.pop %v277
    %v279 = vmul.f32 %v278, 0.5
    %v280 = vadd.f32 %v279, 0.5
    %v281 = vtanh.pop %v271
    %v282 = vmul.f32 %v272, 0.5
    %v283 = vtanh.pop %v282
    %v284 = vmul.f32 %v283, 0.5
    %v285 = vadd.f32 %v284, 0.5
    %v286 = vmul.f32 %v280, 0.0
    %v287 = vmul.f32 %v276, %v281
    %v288 = vadd.f32 %v286, %v287
    %v289 = vtanh.pop %v288
    %v290 = vmul.f32 %v285, %v289
    %291 = vset.pattern.permute.xlu0 2
    %292 = vperm.xlu0 %291, %v136
    %v293 = vpop.permute.xlu0 %292
    %v295 = vmul.f32 %v293, %v143
    %v296 = vmul.f32 %v293, %v144
    %v297 = vmul.f32 %v293, %v145
    %v298 = vmul.f32 %v293, %v146
    %v299 = vadd.f32 %v156, %v295
    %v300 = vadd.f32 %v157, %v296
    %v301 = vadd.f32 %v158, %v297
    %v302 = vadd.f32 %v159, %v298
    %303 = vset.pattern.permute.xlu0 3
    %304 = vperm.xlu0 %303, %v136
    %v305 = vpop.permute.xlu0 %304
    %v307 = vmul.f32 %v305, %v173
    %v308 = vmul.f32 %v305, %v174
    %v309 = vmul.f32 %v305, %v175
    %v310 = vmul.f32 %v305, %v176
    %v311 = vadd.f32 %v299, %v307
    %v312 = vadd.f32 %v300, %v308
    %v313 = vadd.f32 %v301, %v309
    %v314 = vadd.f32 %v302, %v310
    %315 = vmatpush.msra.mxu0 %v128
    %316 = vmatpush.msra.mxu0 %v124
    %317 = vmatpush.msra.mxu0 %v120
    %318 = vmatpush.msra.mxu0 %v116
    %319 = vmatpush.msra.mxu0 %v112
    %320 = vmatpush.msra.mxu0 %v108
    %321 = vmatpush.msra.mxu0 %v104
    %322 = vmatpush.msra.mxu0 %v100
    %323 = vmatpush.msra.mxu0 %v96
    %324 = vmatpush.msra.mxu0 %v92
    %325 = vmatpush.msra.mxu0 %v88
    %326 = vmatpush.msra.mxu0 %v84
    %327 = vmatpush.msra.mxu0 %v80
    %328 = vmatpush.msra.mxu0 %v76
    %329 = vmatpush.msra.mxu0 %v72
    %330 = vmatpush.msra.mxu0 %v68
    %331 = vmatmul.f32.gmra.mxu0 %v290
    %v332 = vpop.f32.mrf.mxu0
    %v333 = vadd.f32 0.0, %v332
    %334 = vdwg.mxu0
    %335 = vmatpush.msra.mxu0 %v129
    %336 = vmatpush.msra.mxu0 %v125
    %337 = vmatpush.msra.mxu0 %v121
    %338 = vmatpush.msra.mxu0 %v117
    %339 = vmatpush.msra.mxu0 %v113
    %340 = vmatpush.msra.mxu0 %v109
    %341 = vmatpush.msra.mxu0 %v105
    %342 = vmatpush.msra.mxu0 %v101
    %343 = vmatpush.msra.mxu0 %v97
    %344 = vmatpush.msra.mxu0 %v93
    %345 = vmatpush.msra.mxu0 %v89
    %346 = vmatpush.msra.mxu0 %v85
    %347 = vmatpush.msra.mxu0 %v81
    %348 = vmatpush.msra.mxu0 %v77
    %349 = vmatpush.msra.mxu0 %v73
    %350 = vmatpush.msra.mxu0 %v69
    %351 = vmatmul.f32.gmra.mxu0 %v290
    %v352 = vpop.f32.mrf.mxu0
    %v353 = vadd.f32 0.0, %v352
    %354 = vdwg.mxu0
    %355 = vmatpush.msra.mxu0 %v130
    %356 = vmatpush.msra.mxu0 %v126
    %357 = vmatpush.msra.mxu0 %v122
    %358 = vmatpush.msra.mxu0 %v118
    %359 = vmatpush.msra.mxu0 %v114
    %360 = vmatpush.msra.mxu0 %v110
    %361 = vmatpush.msra.mxu0 %v106
    %362 = vmatpush.msra.mxu0 %v102
    %363 = vmatpush.msra.mxu0 %v98
    %364 = vmatpush.msra.mxu0 %v94
    %365 = vmatpush.msra.mxu0 %v90
    %366 = vmatpush.msra.mxu0 %v86
    %367 = vmatpush.msra.mxu0 %v82
    %368 = vmatpush.msra.mxu0 %v78
    %369 = vmatpush.msra.mxu0 %v74
    %370 = vmatpush.msra.mxu0 %v70
    %371 = vmatmul.f32.gmra.mxu0 %v290
    %v372 = vpop.f32.mrf.mxu0
    %v373 = vadd.f32 0.0, %v372
    %374 = vdwg.mxu0
    %375 = vmatpush.msra.mxu0 %v131
    %376 = vmatpush.msra.mxu0 %v127
    %377 = vmatpush.msra.mxu0 %v123
    %378 = vmatpush.msra.mxu0 %v119
    %379 = vmatpush.msra.mxu0 %v115
    %380 = vmatpush.msra.mxu0 %v111
    %381 = vmatpush.msra.mxu0 %v107
    %382 = vmatpush.msra.mxu0 %v103
    %383 = vmatpush.msra.mxu0 %v99
    %384 = vmatpush.msra.mxu0 %v95
    %385 = vmatpush.msra.mxu0 %v91
    %386 = vmatpush.msra.mxu0 %v87
    %387 = vmatpush.msra.mxu0 %v83
    %388 = vmatpush.msra.mxu0 %v79
    %389 = vmatpush.msra.mxu0 %v75
    %390 = vmatpush.msra.mxu0 %v71
    %391 = vmatmul.f32.gmra.mxu0 %v290
    %v392 = vpop.f32.mrf.mxu0
    %v393 = vadd.f32 0.0, %v392
    %394 = vdwg.mxu0
    %v395 = vadd.f32 %v311, %v333
    %v396 = vadd.f32 %v312, %v353
    %v397 = vadd.f32 %v313, %v373
    %v398 = vadd.f32 %v314, %v393
    %v399 = vmul.f32 %v395, 0.5
    %v400 = vtanh.pop %v399
    %v401 = vmul.f32 %v400, 0.5
    %v402 = vadd.f32 %v401, 0.5
    %v403 = vmul.f32 %v396, 0.5
    %v404 = vtanh.pop %v403
    %v405 = vmul.f32 %v404, 0.5
    %v406 = vadd.f32 %v405, 0.5
    %v407 = vtanh.pop %v397
    %v408 = vmul.f32 %v398, 0.5
    %v409 = vtanh.pop %v408
    %v410 = vmul.f32 %v409, 0.5
    %v411 = vadd.f32 %v410, 0.5
    %v412 = vmul.f32 %v406, %v288
    %v413 = vmul.f32 %v402, %v407
    %v414 = vadd.f32 %v412, %v413
    %v415 = vtanh.pop %v414
    %v416 = vmul.f32 %v411, %v415
    %417 = vset.pattern.permute.xlu0 4
    %418 = vperm.xlu0 %417, %v136
    %v419 = vpop.permute.xlu0 %418
    %v421 = vmul.f32 %v419, %v143
    %v422 = vmul.f32 %v419, %v144
    %v423 = vmul.f32 %v419, %v145
    %v424 = vmul.f32 %v419, %v146
    %v425 = vadd.f32 %v156, %v421
    %v426 = vadd.f32 %v157, %v422
    %v427 = vadd.f32 %v158, %v423
    %v428 = vadd.f32 %v159, %v424
    %429 = vset.pattern.permute.xlu0 5
    %430 = vperm.xlu0 %429, %v136
    %v431 = vpop.permute.xlu0 %430
    %v433 = vmul.f32 %v431, %v173
    %v434 = vmul.f32 %v431, %v174
    %v435 = vmul.f32 %v431, %v175
    %v436 = vmul.f32 %v431, %v176
    %v437 = vadd.f32 %v425, %v433
    %v438 = vadd.f32 %v426, %v434
    %v439 = vadd.f32 %v427, %v435
    %v440 = vadd.f32 %v428, %v436
    %441 = vmatpush.msra.mxu0 %v128
    %442 = vmatpush.msra.mxu0 %v124
    %443 = vmatpush.msra.mxu0 %v120
    %444 = vmatpush.msra.mxu0 %v116
    %445 = vmatpush.msra.mxu0 %v112
    %446 = vmatpush.msra.mxu0 %v108
    %447 = vmatpush.msra.mxu0 %v104
    %448 = vmatpush.msra.mxu0 %v100
    %449 = vmatpush.msra.mxu0 %v96
    %450 = vmatpush.msra.mxu0 %v92
    %451 = vmatpush.msra.mxu0 %v88
    %452 = vmatpush.msra.mxu0 %v84
    %453 = vmatpush.msra.mxu0 %v80
    %454 = vmatpush.msra.mxu0 %v76
    %455 = vmatpush.msra.mxu0 %v72
    %456 = vmatpush.msra.mxu0 %v68
    %457 = vmatmul.f32.gmra.mxu0 %v416
    %v458 = vpop.f32.mrf.mxu0
    %v459 = vadd.f32 0.0, %v458
    %460 = vdwg.mxu0
    %461 = vmatpush.msra.mxu0 %v129
    %462 = vmatpush.msra.mxu0 %v125
    %463 = vmatpush.msra.mxu0 %v121
    %464 = vmatpush.msra.mxu0 %v117
    %465 = vmatpush.msra.mxu0 %v113
    %466 = vmatpush.msra.mxu0 %v109
    %467 = vmatpush.msra.mxu0 %v105
    %468 = vmatpush.msra.mxu0 %v101
    %469 = vmatpush.msra.mxu0 %v97
    %470 = vmatpush.msra.mxu0 %v93
    %471 = vmatpush.msra.mxu0 %v89
    %472 = vmatpush.msra.mxu0 %v85
    %473 = vmatpush.msra.mxu0 %v81
    %474 = vmatpush.msra.mxu0 %v77
    %475 = vmatpush.msra.mxu0 %v73
    %476 = vmatpush.msra.mxu0 %v69
    %477 = vmatmul.f32.gmra.mxu0 %v416
    %v478 = vpop.f32.mrf.mxu0
    %v479 = vadd.f32 0.0, %v478
    %480 = vdwg.mxu0
    %481 = vmatpush.msra.mxu0 %v130
    %482 = vmatpush.msra.mxu0 %v126
    %483 = vmatpush.msra.mxu0 %v122
    %484 = vmatpush.msra.mxu0 %v118
    %485 = vmatpush.msra.mxu0 %v114
    %486 = vmatpush.msra.mxu0 %v110
    %487 = vmatpush.msra.mxu0 %v106
    %488 = vmatpush.msra.mxu0 %v102
    %489 = vmatpush.msra.mxu0 %v98
    %490 = vmatpush.msra.mxu0 %v94
    %491 = vmatpush.msra.mxu0 %v90
    %492 = vmatpush.msra.mxu0 %v86
    %493 = vmatpush.msra.mxu0 %v82
    %494 = vmatpush.msra.mxu0 %v78
    %495 = vmatpush.msra.mxu0 %v74
    %496 = vmatpush.msra.mxu0 %v70
    %497 = vmatmul.f32.gmra.mxu0 %v416
    %v498 = vpop.f32.mrf.mxu0
    %v499 = vadd.f32 0.0, %v498
    %500 = vdwg.mxu0
    %501 = vmatpush.msra.mxu0 %v131
    %502 = vmatpush.msra.mxu0 %v127
    %503 = vmatpush.msra.mxu0 %v123
    %504 = vmatpush.msra.mxu0 %v119
    %505 = vmatpush.msra.mxu0 %v115
    %506 = vmatpush.msra.mxu0 %v111
    %507 = vmatpush.msra.mxu0 %v107
    %508 = vmatpush.msra.mxu0 %v103
    %509 = vmatpush.msra.mxu0 %v99
    %510 = vmatpush.msra.mxu0 %v95
    %511 = vmatpush.msra.mxu0 %v91
    %512 = vmatpush.msra.mxu0 %v87
    %513 = vmatpush.msra.mxu0 %v83
    %514 = vmatpush.msra.mxu0 %v79
    %515 = vmatpush.msra.mxu0 %v75
    %516 = vmatpush.msra.mxu0 %v71
    %517 = vmatmul.f32.gmra.mxu0 %v416
    %v518 = vpop.f32.mrf.mxu0
    %v519 = vadd.f32 0.0, %v518
    %520 = vdwg.mxu0
    %v521 = vadd.f32 %v437, %v459
    %v522 = vadd.f32 %v438, %v479
    %v523 = vadd.f32 %v439, %v499
    %v524 = vadd.f32 %v440, %v519
    %v525 = vmul.f32 %v521, 0.5
    %v526 = vtanh.pop %v525
    %v527 = vmul.f32 %v526, 0.5
    %v528 = vadd.f32 %v527, 0.5
    %v529 = vmul.f32 %v522, 0.5
    %v530 = vtanh.pop %v529
    %v531 = vmul.f32 %v530, 0.5
    %v532 = vadd.f32 %v531, 0.5
    %v533 = vtanh.pop %v523
    %v534 = vmul.f32 %v524, 0.5
    %v535 = vtanh.pop %v534
    %v536 = vmul.f32 %v535, 0.5
    %v537 = vadd.f32 %v536, 0.5
    %v538 = vmul.f32 %v532, %v414
    %v539 = vmul.f32 %v528, %v533
    %v540 = vadd.f32 %v538, %v539
    %v541 = vtanh.pop %v540
    %v542 = vmul.f32 %v537, %v541
    %543 = vset.pattern.permute.xlu0 6
    %544 = vperm.xlu0 %543, %v136
    %v545 = vpop.permute.xlu0 %544
    %v547 = vmul.f32 %v545, %v143
    %v548 = vmul.f32 %v545, %v144
    %v549 = vmul.f32 %v545, %v145
    %v550 = vmul.f32 %v545, %v146
    %v551 = vadd.f32 %v156, %v547
    %v552 = vadd.f32 %v157, %v548
    %v553 = vadd.f32 %v158, %v549
    %v554 = vadd.f32 %v159, %v550
    %555 = vset.pattern.permute.xlu0 7
    %556 = vperm.xlu0 %555, %v136
    %v557 = vpop.permute.xlu0 %556
    %v559 = vmul.f32 %v557, %v173
    %v560 = vmul.f32 %v557, %v174
    %v561 = vmul.f32 %v557, %v175
    %v562 = vmul.f32 %v557, %v176
    %v563 = vadd.f32 %v551, %v559
    %v564 = vadd.f32 %v552, %v560
    %v565 = vadd.f32 %v553, %v561
    %v566 = vadd.f32 %v554, %v562
    %567 = vmatpush.msra.mxu0 %v128
    %568 = vmatpush.msra.mxu0 %v124
    %569 = vmatpush.msra.mxu0 %v120
    %570 = vmatpush.msra.mxu0 %v116
    %571 = vmatpush.msra.mxu0 %v112
    %572 = vmatpush.msra.mxu0 %v108
    %573 = vmatpush.msra.mxu0 %v104
    %574 = vmatpush.msra.mxu0 %v100
    %575 = vmatpush.msra.mxu0 %v96
    %576 = vmatpush.msra.mxu0 %v92
    %577 = vmatpush.msra.mxu0 %v88
    %578 = vmatpush.msra.mxu0 %v84
    %579 = vmatpush.msra.mxu0 %v80
    %580 = vmatpush.msra.mxu0 %v76
    %581 = vmatpush.msra.mxu0 %v72
    %582 = vmatpush.msra.mxu0 %v68
    %583 = vmatmul.f32.gmra.mxu0 %v542
    %v584 = vpop.f32.mrf.mxu0
    %v585 = vadd.f32 0.0, %v584
    %586 = vdwg.mxu0
    %587 = vmatpush.msra.mxu0 %v129
    %588 = vmatpush.msra.mxu0 %v125
    %589 = vmatpush.msra.mxu0 %v121
    %590 = vmatpush.msra.mxu0 %v117
    %591 = vmatpush.msra.mxu0 %v113
    %592 = vmatpush.msra.mxu0 %v109
    %593 = vmatpush.msra.mxu0 %v105
    %594 = vmatpush.msra.mxu0 %v101
    %595 = vmatpush.msra.mxu0 %v97
    %596 = vmatpush.msra.mxu0 %v93
    %597 = vmatpush.msra.mxu0 %v89
    %598 = vmatpush.msra.mxu0 %v85
    %599 = vmatpush.msra.mxu0 %v81
    %600 = vmatpush.msra.mxu0 %v77
    %601 = vmatpush.msra.mxu0 %v73
    %602 = vmatpush.msra.mxu0 %v69
    %603 = vmatmul.f32.gmra.mxu0 %v542
    %v604 = vpop.f32.mrf.mxu0
    %v605 = vadd.f32 0.0, %v604
    %606 = vdwg.mxu0
    %607 = vmatpush.msra.mxu0 %v130
    %608 = vmatpush.msra.mxu0 %v126
    %609 = vmatpush.msra.mxu0 %v122
    %610 = vmatpush.msra.mxu0 %v118
    %611 = vmatpush.msra.mxu0 %v114
    %612 = vmatpush.msra.mxu0 %v110
    %613 = vmatpush.msra.mxu0 %v106
    %614 = vmatpush.msra.mxu0 %v102
    %615 = vmatpush.msra.mxu0 %v98
    %616 = vmatpush.msra.mxu0 %v94
    %617 = vmatpush.msra.mxu0 %v90
    %618 = vmatpush.msra.mxu0 %v86
    %619 = vmatpush.msra.mxu0 %v82
    %620 = vmatpush.msra.mxu0 %v78
    %621 = vmatpush.msra.mxu0 %v74
    %622 = vmatpush.msra.mxu0 %v70
    %623 = vmatmul.f32.gmra.mxu0 %v542
    %v624 = vpop.f32.mrf.mxu0
    %v625 = vadd.f32 0.0, %v624
    %626 = vdwg.mxu0
    %627 = vmatpush.msra.mxu0 %v131
    %628 = vmatpush.msra.mxu0 %v127
    %629 = vmatpush.msra.mxu0 %v123
    %630 = vmatpush.msra.mxu0 %v119
    %631 = vmatpush.msra.mxu0 %v115
    %632 = vmatpush.msra.mxu0 %v111
    %633 = vmatpush.msra.mxu0 %v107
    %634 = vmatpush.msra.mxu0 %v103
    %635 = vmatpush.msra.mxu0 %v99
    %636 = vmatpush.msra.mxu0 %v95
    %637 = vmatpush.msra.mxu0 %v91
    %638 = vmatpush.msra.mxu0 %v87
    %639 = vmatpush.msra.mxu0 %v83
    %640 = vmatpush.msra.mxu0 %v79
    %641 = vmatpush.msra.mxu0 %v75
    %642 = vmatpush.msra.mxu0 %v71
    %643 = vmatmul.f32.gmra.mxu0 %v542
    %v644 = vpop.f32.mrf.mxu0
    %v645 = vadd.f32 0.0, %v644
    %646 = vdwg.mxu0
    %v647 = vadd.f32 %v563, %v585
    %v648 = vadd.f32 %v564, %v605
    %v649 = vadd.f32 %v565, %v625
    %v650 = vadd.f32 %v566, %v645
    %v651 = vmul.f32 %v647, 0.5
    %v652 = vtanh.pop %v651
    %v653 = vmul.f32 %v652, 0.5
    %v654 = vadd.f32 %v653, 0.5
    %v655 = vmul.f32 %v648, 0.5
    %v656 = vtanh.pop %v655
    %v657 = vmul.f32 %v656, 0.5
    %v658 = vadd.f32 %v657, 0.5
    %v659 = vtanh.pop %v649
    %v660 = vmul.f32 %v650, 0.5
    %v661 = vtanh.pop %v660
    %v662 = vmul.f32 %v661, 0.5
    %v663 = vadd.f32 %v662, 0.5
    %v664 = vmul.f32 %v658, %v540
    %v665 = vmul.f32 %v654, %v659
    %v666 = vadd.f32 %v664, %v665
    %v667 = vtanh.pop %v666
    %v668 = vmul.f32 %v663, %v667
    %669 = vset.pattern.permute.xlu0 8
    %670 = vperm.xlu0 %669, %v136
    %v671 = vpop.permute.xlu0 %670
    %v673 = vmul.f32 %v671, %v143
    %v674 = vmul.f32 %v671, %v144
    %v675 = vmul.f32 %v671, %v145
    %v676 = vmul.f32 %v671, %v146
    %v677 = vadd.f32 %v156, %v673
    %v678 = vadd.f32 %v157, %v674
    %v679 = vadd.f32 %v158, %v675
    %v680 = vadd.f32 %v159, %v676
    %681 = vset.pattern.permute.xlu0 9
    %682 = vperm.xlu0 %681, %v136
    %v683 = vpop.permute.xlu0 %682
    %v685 = vmul.f32 %v683, %v173
    %v686 = vmul.f32 %v683, %v174
    %v687 = vmul.f32 %v683, %v175
    %v688 = vmul.f32 %v683, %v176
    %v689 = vadd.f32 %v677, %v685
    %v690 = vadd.f32 %v678, %v686
    %v691 = vadd.f32 %v679, %v687
    %v692 = vadd.f32 %v680, %v688
    %693 = vmatpush.msra.mxu0 %v128
    %694 = vmatpush.msra.mxu0 %v124
    %695 = vmatpush.msra.mxu0 %v120
    %696 = vmatpush.msra.mxu0 %v116
    %697 = vmatpush.msra.mxu0 %v112
    %698 = vmatpush.msra.mxu0 %v108
    %699 = vmatpush.msra.mxu0 %v104
    %700 = vmatpush.msra.mxu0 %v100
    %701 = vmatpush.msra.mxu0 %v96
    %702 = vmatpush.msra.mxu0 %v92
    %703 = vmatpush.msra.mxu0 %v88
    %704 = vmatpush.msra.mxu0 %v84
    %705 = vmatpush.msra.mxu0 %v80
    %706 = vmatpush.msra.mxu0 %v76
    %707 = vmatpush.msra.mxu0 %v72
    %708 = vmatpush.msra.mxu0 %v68
    %709 = vmatmul.f32.gmra.mxu0 %v668
    %v710 = vpop.f32.mrf.mxu0
    %v711 = vadd.f32 0.0, %v710
    %712 = vdwg.mxu0
    %713 = vmatpush.msra.mxu0 %v129
    %714 = vmatpush.msra.mxu0 %v125
    %715 = vmatpush.msra.mxu0 %v121
    %716 = vmatpush.msra.mxu0 %v117
    %717 = vmatpush.msra.mxu0 %v113
    %718 = vmatpush.msra.mxu0 %v109
    %719 = vmatpush.msra.mxu0 %v105
    %720 = vmatpush.msra.mxu0 %v101
    %721 = vmatpush.msra.mxu0 %v97
    %722 = vmatpush.msra.mxu0 %v93
    %723 = vmatpush.msra.mxu0 %v89
    %724 = vmatpush.msra.mxu0 %v85
    %725 = vmatpush.msra.mxu0 %v81
    %726 = vmatpush.msra.mxu0 %v77
    %727 = vmatpush.msra.mxu0 %v73
    %728 = vmatpush.msra.mxu0 %v69
    %729 = vmatmul.f32.gmra.mxu0 %v668
    %v730 = vpop.f32.mrf.mxu0
    %v731 = vadd.f32 0.0, %v730
    %732 = vdwg.mxu0
    %733 = vmatpush.msra.mxu0 %v130
    %734 = vmatpush.msra.mxu0 %v126
    %735 = vmatpush.msra.mxu0 %v122
    %736 = vmatpush.msra.mxu0 %v118
    %737 = vmatpush.msra.mxu0 %v114
    %738 = vmatpush.msra.mxu0 %v110
    %739 = vmatpush.msra.mxu0 %v106
    %740 = vmatpush.msra.mxu0 %v102
    %741 = vmatpush.msra.mxu0 %v98
    %742 = vmatpush.msra.mxu0 %v94
    %743 = vmatpush.msra.mxu0 %v90
    %744 = vmatpush.msra.mxu0 %v86
    %745 = vmatpush.msra.mxu0 %v82
    %746 = vmatpush.msra.mxu0 %v78
    %747 = vmatpush.msra.mxu0 %v74
    %748 = vmatpush.msra.mxu0 %v70
    %749 = vmatmul.f32.gmra.mxu0 %v668
    %v750 = vpop.f32.mrf.mxu0
    %v751 = vadd.f32 0.0, %v750
    %752 = vdwg.mxu0
    %753 = vmatpush.msra.mxu0 %v131
    %754 = vmatpush.msra.mxu0 %v127
    %755 = vmatpush.msra.mxu0 %v123
    %756 = vmatpush.msra.mxu0 %v119
    %757 = vmatpush.msra.mxu0 %v115
    %758 = vmatpush.msra.mxu0 %v111
    %759 = vmatpush.msra.mxu0 %v107
    %760 = vmatpush.msra.mxu0 %v103
    %761 = vmatpush.msra.mxu0 %v99
    %762 = vmatpush.msra.mxu0 %v95
    %763 = vmatpush.msra.mxu0 %v91
    %764 = vmatpush.msra.mxu0 %v87
    %765 = vmatpush.msra.mxu0 %v83
    %766 = vmatpush.msra.mxu0 %v79
    %767 = vmatpush.msra.mxu0 %v75
    %768 = vmatpush.msra.mxu0 %v71
    %769 = vmatmul.f32.gmra.mxu0 %v668
    %v770 = vpop.f32.mrf.mxu0
    %v771 = vadd.f32 0.0, %v770
    %772 = vdwg.mxu0
    %v773 = vadd.f32 %v689, %v711
    %v774 = vadd.f32 %v690, %v731
    %v775 = vadd.f32 %v691, %v751
    %v776 = vadd.f32 %v692, %v771
    %v777 = vmul.f32 %v773, 0.5
    %v778 = vtanh.pop %v777
    %v779 = vmul.f32 %v778, 0.5
    %v780 = vadd.f32 %v779, 0.5
    %v781 = vmul.f32 %v774, 0.5
    %v782 = vtanh.pop %v781
    %v783 = vmul.f32 %v782, 0.5
    %v784 = vadd.f32 %v783, 0.5
    %v785 = vtanh.pop %v775
    %v786 = vmul.f32 %v776, 0.5
    %v787 = vtanh.pop %v786
    %v788 = vmul.f32 %v787, 0.5
    %v789 = vadd.f32 %v788, 0.5
    %v790 = vmul.f32 %v784, %v666
    %v791 = vmul.f32 %v780, %v785
    %v792 = vadd.f32 %v790, %v791
    %v793 = vtanh.pop %v792
    %v794 = vmul.f32 %v789, %v793
    %795 = vset.pattern.permute.xlu0 10
    %796 = vperm.xlu0 %795, %v136
    %v797 = vpop.permute.xlu0 %796
    %v799 = vmul.f32 %v797, %v143
    %v800 = vmul.f32 %v797, %v144
    %v801 = vmul.f32 %v797, %v145
    %v802 = vmul.f32 %v797, %v146
    %v803 = vadd.f32 %v156, %v799
    %v804 = vadd.f32 %v157, %v800
    %v805 = vadd.f32 %v158, %v801
    %v806 = vadd.f32 %v159, %v802
    %807 = vset.pattern.permute.xlu0 11
    %808 = vperm.xlu0 %807, %v136
    %v809 = vpop.permute.xlu0 %808
    %v811 = vmul.f32 %v809, %v173
    %v812 = vmul.f32 %v809, %v174
    %v813 = vmul.f32 %v809, %v175
    %v814 = vmul.f32 %v809, %v176
    %v815 = vadd.f32 %v803, %v811
    %v816 = vadd.f32 %v804, %v812
    %v817 = vadd.f32 %v805, %v813
    %v818 = vadd.f32 %v806, %v814
    %819 = vmatpush.msra.mxu0 %v128
    %820 = vmatpush.msra.mxu0 %v124
    %821 = vmatpush.msra.mxu0 %v120
    %822 = vmatpush.msra.mxu0 %v116
    %823 = vmatpush.msra.mxu0 %v112
    %824 = vmatpush.msra.mxu0 %v108
    %825 = vmatpush.msra.mxu0 %v104
    %826 = vmatpush.msra.mxu0 %v100
    %827 = vmatpush.msra.mxu0 %v96
    %828 = vmatpush.msra.mxu0 %v92
    %829 = vmatpush.msra.mxu0 %v88
    %830 = vmatpush.msra.mxu0 %v84
    %831 = vmatpush.msra.mxu0 %v80
    %832 = vmatpush.msra.mxu0 %v76
    %833 = vmatpush.msra.mxu0 %v72
    %834 = vmatpush.msra.mxu0 %v68
    %835 = vmatmul.f32.gmra.mxu0 %v794
    %v836 = vpop.f32.mrf.mxu0
    %v837 = vadd.f32 0.0, %v836
    %838 = vdwg.mxu0
    %839 = vmatpush.msra.mxu0 %v129
    %840 = vmatpush.msra.mxu0 %v125
    %841 = vmatpush.msra.mxu0 %v121
    %842 = vmatpush.msra.mxu0 %v117
    %843 = vmatpush.msra.mxu0 %v113
    %844 = vmatpush.msra.mxu0 %v109
    %845 = vmatpush.msra.mxu0 %v105
    %846 = vmatpush.msra.mxu0 %v101
    %847 = vmatpush.msra.mxu0 %v97
    %848 = vmatpush.msra.mxu0 %v93
    %849 = vmatpush.msra.mxu0 %v89
    %850 = vmatpush.msra.mxu0 %v85
    %851 = vmatpush.msra.mxu0 %v81
    %852 = vmatpush.msra.mxu0 %v77
    %853 = vmatpush.msra.mxu0 %v73
    %854 = vmatpush.msra.mxu0 %v69
    %855 = vmatmul.f32.gmra.mxu0 %v794
    %v856 = vpop.f32.mrf.mxu0
    %v857 = vadd.f32 0.0, %v856
    %858 = vdwg.mxu0
    %859 = vmatpush.msra.mxu0 %v130
    %860 = vmatpush.msra.mxu0 %v126
    %861 = vmatpush.msra.mxu0 %v122
    %862 = vmatpush.msra.mxu0 %v118
    %863 = vmatpush.msra.mxu0 %v114
    %864 = vmatpush.msra.mxu0 %v110
    %865 = vmatpush.msra.mxu0 %v106
    %866 = vmatpush.msra.mxu0 %v102
    %867 = vmatpush.msra.mxu0 %v98
    %868 = vmatpush.msra.mxu0 %v94
    %869 = vmatpush.msra.mxu0 %v90
    %870 = vmatpush.msra.mxu0 %v86
    %871 = vmatpush.msra.mxu0 %v82
    %872 = vmatpush.msra.mxu0 %v78
    %873 = vmatpush.msra.mxu0 %v74
    %874 = vmatpush.msra.mxu0 %v70
    %875 = vmatmul.f32.gmra.mxu0 %v794
    %v876 = vpop.f32.mrf.mxu0
    %v877 = vadd.f32 0.0, %v876
    %878 = vdwg.mxu0
    %879 = vmatpush.msra.mxu0 %v131
    %880 = vmatpush.msra.mxu0 %v127
    %881 = vmatpush.msra.mxu0 %v123
    %882 = vmatpush.msra.mxu0 %v119
    %883 = vmatpush.msra.mxu0 %v115
    %884 = vmatpush.msra.mxu0 %v111
    %885 = vmatpush.msra.mxu0 %v107
    %886 = vmatpush.msra.mxu0 %v103
    %887 = vmatpush.msra.mxu0 %v99
    %888 = vmatpush.msra.mxu0 %v95
    %889 = vmatpush.msra.mxu0 %v91
    %890 = vmatpush.msra.mxu0 %v87
    %891 = vmatpush.msra.mxu0 %v83
    %892 = vmatpush.msra.mxu0 %v79
    %893 = vmatpush.msra.mxu0 %v75
    %894 = vmatpush.msra.mxu0 %v71
    %895 = vmatmul.f32.gmra.mxu0 %v794
    %v896 = vpop.f32.mrf.mxu0
    %v897 = vadd.f32 0.0, %v896
    %898 = vdwg.mxu0
    %v899 = vadd.f32 %v815, %v837
    %v900 = vadd.f32 %v816, %v857
    %v901 = vadd.f32 %v817, %v877
    %v902 = vadd.f32 %v818, %v897
    %v903 = vmul.f32 %v899, 0.5
    %v904 = vtanh.pop %v903
    %v905 = vmul.f32 %v904, 0.5
    %v906 = vadd.f32 %v905, 0.5
    %v907 = vmul.f32 %v900, 0.5
    %v908 = vtanh.pop %v907
    %v909 = vmul.f32 %v908, 0.5
    %v910 = vadd.f32 %v909, 0.5
    %v911 = vtanh.pop %v901
    %v912 = vmul.f32 %v902, 0.5
    %v913 = vtanh.pop %v912
    %v914 = vmul.f32 %v913, 0.5
    %v915 = vadd.f32 %v914, 0.5
    %v916 = vmul.f32 %v910, %v792
    %v917 = vmul.f32 %v906, %v911
    %v918 = vadd.f32 %v916, %v917
    %v919 = vtanh.pop %v918
    %v920 = vmul.f32 %v915, %v919
    %921 = vset.pattern.permute.xlu0 12
    %922 = vperm.xlu0 %921, %v136
    %v923 = vpop.permute.xlu0 %922
    %v925 = vmul.f32 %v923, %v143
    %v926 = vmul.f32 %v923, %v144
    %v927 = vmul.f32 %v923, %v145
    %v928 = vmul.f32 %v923, %v146
    %v929 = vadd.f32 %v156, %v925
    %v930 = vadd.f32 %v157, %v926
    %v931 = vadd.f32 %v158, %v927
    %v932 = vadd.f32 %v159, %v928
    %933 = vset.pattern.permute.xlu0 13
    %934 = vperm.xlu0 %933, %v136
    %v935 = vpop.permute.xlu0 %934
    %v937 = vmul.f32 %v935, %v173
    %v938 = vmul.f32 %v935, %v174
    %v939 = vmul.f32 %v935, %v175
    %v940 = vmul.f32 %v935, %v176
    %v941 = vadd.f32 %v929, %v937
    %v942 = vadd.f32 %v930, %v938
    %v943 = vadd.f32 %v931, %v939
    %v944 = vadd.f32 %v932, %v940
    %945 = vmatpush.msra.mxu0 %v128
    %946 = vmatpush.msra.mxu0 %v124
    %947 = vmatpush.msra.mxu0 %v120
    %948 = vmatpush.msra.mxu0 %v116
    %949 = vmatpush.msra.mxu0 %v112
    %950 = vmatpush.msra.mxu0 %v108
    %951 = vmatpush.msra.mxu0 %v104
    %952 = vmatpush.msra.mxu0 %v100
    %953 = vmatpush.msra.mxu0 %v96
    %954 = vmatpush.msra.mxu0 %v92
    %955 = vmatpush.msra.mxu0 %v88
    %956 = vmatpush.msra.mxu0 %v84
    %957 = vmatpush.msra.mxu0 %v80
    %958 = vmatpush.msra.mxu0 %v76
    %959 = vmatpush.msra.mxu0 %v72
    %960 = vmatpush.msra.mxu0 %v68
    %961 = vmatmul.f32.gmra.mxu0 %v920
    %v962 = vpop.f32.mrf.mxu0
    %v963 = vadd.f32 0.0, %v962
    %964 = vdwg.mxu0
    %965 = vmatpush.msra.mxu0 %v129
    %966 = vmatpush.msra.mxu0 %v125
    %967 = vmatpush.msra.mxu0 %v121
    %968 = vmatpush.msra.mxu0 %v117
    %969 = vmatpush.msra.mxu0 %v113
    %970 = vmatpush.msra.mxu0 %v109
    %971 = vmatpush.msra.mxu0 %v105
    %972 = vmatpush.msra.mxu0 %v101
    %973 = vmatpush.msra.mxu0 %v97
    %974 = vmatpush.msra.mxu0 %v93
    %975 = vmatpush.msra.mxu0 %v89
    %976 = vmatpush.msra.mxu0 %v85
    %977 = vmatpush.msra.mxu0 %v81
    %978 = vmatpush.msra.mxu0 %v77
    %979 = vmatpush.msra.mxu0 %v73
    %980 = vmatpush.msra.mxu0 %v69
    %981 = vmatmul.f32.gmra.mxu0 %v920
    %v982 = vpop.f32.mrf.mxu0
    %v983 = vadd.f32 0.0, %v982
    %984 = vdwg.mxu0
    %985 = vmatpush.msra.mxu0 %v130
    %986 = vmatpush.msra.mxu0 %v126
    %987 = vmatpush.msra.mxu0 %v122
    %988 = vmatpush.msra.mxu0 %v118
    %989 = vmatpush.msra.mxu0 %v114
    %990 = vmatpush.msra.mxu0 %v110
    %991 = vmatpush.msra.mxu0 %v106
    %992 = vmatpush.msra.mxu0 %v102
    %993 = vmatpush.msra.mxu0 %v98
    %994 = vmatpush.msra.mxu0 %v94
    %995 = vmatpush.msra.mxu0 %v90
    %996 = vmatpush.msra.mxu0 %v86
    %997 = vmatpush.msra.mxu0 %v82
    %998 = vmatpush.msra.mxu0 %v78
    %999 = vmatpush.msra.mxu0 %v74
    %1000 = vmatpush.msra.mxu0 %v70
    %1001 = vmatmul.f32.gmra.mxu0 %v920
    %v1002 = vpop.f32.mrf.mxu0
    %v1003 = vadd.f32 0.0, %v1002
    %1004 = vdwg.mxu0
    %1005 = vmatpush.msra.mxu0 %v131
    %1006 = vmatpush.msra.mxu0 %v127
    %1007 = vmatpush.msra.mxu0 %v123
    %1008 = vmatpush.msra.mxu0 %v119
    %1009 = vmatpush.msra.mxu0 %v115
    %1010 = vmatpush.msra.mxu0 %v111
    %1011 = vmatpush.msra.mxu0 %v107
    %1012 = vmatpush.msra.mxu0 %v103
    %1013 = vmatpush.msra.mxu0 %v99
    %1014 = vmatpush.msra.mxu0 %v95
    %1015 = vmatpush.msra.mxu0 %v91
    %1016 = vmatpush.msra.mxu0 %v87
    %1017 = vmatpush.msra.mxu0 %v83
    %1018 = vmatpush.msra.mxu0 %v79
    %1019 = vmatpush.msra.mxu0 %v75
    %1020 = vmatpush.msra.mxu0 %v71
    %1021 = vmatmul.f32.gmra.mxu0 %v920
    %v1022 = vpop.f32.mrf.mxu0
    %v1023 = vadd.f32 0.0, %v1022
    %1024 = vdwg.mxu0
    %v1025 = vadd.f32 %v941, %v963
    %v1026 = vadd.f32 %v942, %v983
    %v1027 = vadd.f32 %v943, %v1003
    %v1028 = vadd.f32 %v944, %v1023
    %v1029 = vmul.f32 %v1025, 0.5
    %v1030 = vtanh.pop %v1029
    %v1031 = vmul.f32 %v1030, 0.5
    %v1032 = vadd.f32 %v1031, 0.5
    %v1033 = vmul.f32 %v1026, 0.5
    %v1034 = vtanh.pop %v1033
    %v1035 = vmul.f32 %v1034, 0.5
    %v1036 = vadd.f32 %v1035, 0.5
    %v1037 = vtanh.pop %v1027
    %v1038 = vmul.f32 %v1028, 0.5
    %v1039 = vtanh.pop %v1038
    %v1040 = vmul.f32 %v1039, 0.5
    %v1041 = vadd.f32 %v1040, 0.5
    %v1042 = vmul.f32 %v1036, %v918
    %v1043 = vmul.f32 %v1032, %v1037
    %v1044 = vadd.f32 %v1042, %v1043
    %v1045 = vtanh.pop %v1044
    %v1046 = vmul.f32 %v1041, %v1045
    %1047 = vset.pattern.permute.xlu0 14
    %1048 = vperm.xlu0 %1047, %v136
    %v1049 = vpop.permute.xlu0 %1048
    %v1051 = vmul.f32 %v1049, %v143
    %v1052 = vmul.f32 %v1049, %v144
    %v1053 = vmul.f32 %v1049, %v145
    %v1054 = vmul.f32 %v1049, %v146
    %v1055 = vadd.f32 %v156, %v1051
    %v1056 = vadd.f32 %v157, %v1052
    %v1057 = vadd.f32 %v158, %v1053
    %v1058 = vadd.f32 %v159, %v1054
    %1059 = vset.pattern.permute.xlu0 15
    %1060 = vperm.xlu0 %1059, %v136
    %v1061 = vpop.permute.xlu0 %1060
    %v1063 = vmul.f32 %v1061, %v173
    %v1064 = vmul.f32 %v1061, %v174
    %v1065 = vmul.f32 %v1061, %v175
    %v1066 = vmul.f32 %v1061, %v176
    %v1067 = vadd.f32 %v1055, %v1063
    %v1068 = vadd.f32 %v1056, %v1064
    %v1069 = vadd.f32 %v1057, %v1065
    %v1070 = vadd.f32 %v1058, %v1066
    %1071 = vmatpush.msra.mxu0 %v128
    %1072 = vmatpush.msra.mxu0 %v124
    %1073 = vmatpush.msra.mxu0 %v120
    %1074 = vmatpush.msra.mxu0 %v116
    %1075 = vmatpush.msra.mxu0 %v112
    %1076 = vmatpush.msra.mxu0 %v108
    %1077 = vmatpush.msra.mxu0 %v104
    %1078 = vmatpush.msra.mxu0 %v100
    %1079 = vmatpush.msra.mxu0 %v96
    %1080 = vmatpush.msra.mxu0 %v92
    %1081 = vmatpush.msra.mxu0 %v88
    %1082 = vmatpush.msra.mxu0 %v84
    %1083 = vmatpush.msra.mxu0 %v80
    %1084 = vmatpush.msra.mxu0 %v76
    %1085 = vmatpush.msra.mxu0 %v72
    %1086 = vmatpush.msra.mxu0 %v68
    %1087 = vmatmul.f32.gmra.mxu0 %v1046
    %v1088 = vpop.f32.mrf.mxu0
    %v1089 = vadd.f32 0.0, %v1088
    %1090 = vdwg.mxu0
    %1091 = vmatpush.msra.mxu0 %v129
    %1092 = vmatpush.msra.mxu0 %v125
    %1093 = vmatpush.msra.mxu0 %v121
    %1094 = vmatpush.msra.mxu0 %v117
    %1095 = vmatpush.msra.mxu0 %v113
    %1096 = vmatpush.msra.mxu0 %v109
    %1097 = vmatpush.msra.mxu0 %v105
    %1098 = vmatpush.msra.mxu0 %v101
    %1099 = vmatpush.msra.mxu0 %v97
    %1100 = vmatpush.msra.mxu0 %v93
    %1101 = vmatpush.msra.mxu0 %v89
    %1102 = vmatpush.msra.mxu0 %v85
    %1103 = vmatpush.msra.mxu0 %v81
    %1104 = vmatpush.msra.mxu0 %v77
    %1105 = vmatpush.msra.mxu0 %v73
    %1106 = vmatpush.msra.mxu0 %v69
    %1107 = vmatmul.f32.gmra.mxu0 %v1046
    %v1108 = vpop.f32.mrf.mxu0
    %v1109 = vadd.f32 0.0, %v1108
    %1110 = vdwg.mxu0
    %1111 = vmatpush.msra.mxu0 %v130
    %1112 = vmatpush.msra.mxu0 %v126
    %1113 = vmatpush.msra.mxu0 %v122
    %1114 = vmatpush.msra.mxu0 %v118
    %1115 = vmatpush.msra.mxu0 %v114
    %1116 = vmatpush.msra.mxu0 %v110
    %1117 = vmatpush.msra.mxu0 %v106
    %1118 = vmatpush.msra.mxu0 %v102
    %1119 = vmatpush.msra.mxu0 %v98
    %1120 = vmatpush.msra.mxu0 %v94
    %1121 = vmatpush.msra.mxu0 %v90
    %1122 = vmatpush.msra.mxu0 %v86
    %1123 = vmatpush.msra.mxu0 %v82
    %1124 = vmatpush.msra.mxu0 %v78
    %1125 = vmatpush.msra.mxu0 %v74
    %1126 = vmatpush.msra.mxu0 %v70
    %1127 = vmatmul.f32.gmra.mxu0 %v1046
    %v1128 = vpop.f32.mrf.mxu0
    %v1129 = vadd.f32 0.0, %v1128
    %1130 = vdwg.mxu0
    %1131 = vmatpush.msra.mxu0 %v131
    %1132 = vmatpush.msra.mxu0 %v127
    %1133 = vmatpush.msra.mxu0 %v123
    %1134 = vmatpush.msra.mxu0 %v119
    %1135 = vmatpush.msra.mxu0 %v115
    %1136 = vmatpush.msra.mxu0 %v111
    %1137 = vmatpush.msra.mxu0 %v107
    %1138 = vmatpush.msra.mxu0 %v103
    %1139 = vmatpush.msra.mxu0 %v99
    %1140 = vmatpush.msra.mxu0 %v95
    %1141 = vmatpush.msra.mxu0 %v91
    %1142 = vmatpush.msra.mxu0 %v87
    %1143 = vmatpush.msra.mxu0 %v83
    %1144 = vmatpush.msra.mxu0 %v79
    %1145 = vmatpush.msra.mxu0 %v75
    %1146 = vmatpush.msra.mxu0 %v71
    %1147 = vmatmul.f32.gmra.mxu0 %v1046
    %v1148 = vpop.f32.mrf.mxu0
    %v1149 = vadd.f32 0.0, %v1148
    %1150 = vdwg.mxu0
    %v1151 = vadd.f32 %v1067, %v1089
    %v1152 = vadd.f32 %v1068, %v1109
    %v1153 = vadd.f32 %v1069, %v1129
    %v1154 = vadd.f32 %v1070, %v1149
    %v1155 = vmul.f32 %v1151, 0.5
    %v1156 = vtanh.pop %v1155
    %v1157 = vmul.f32 %v1156, 0.5
    %v1158 = vadd.f32 %v1157, 0.5
    %v1159 = vmul.f32 %v1152, 0.5
    %v1160 = vtanh.pop %v1159
    %v1161 = vmul.f32 %v1160, 0.5
    %v1162 = vadd.f32 %v1161, 0.5
    %v1163 = vtanh.pop %v1153
    %v1164 = vmul.f32 %v1154, 0.5
    %v1165 = vtanh.pop %v1164
    %v1166 = vmul.f32 %v1165, 0.5
    %v1167 = vadd.f32 %v1166, 0.5
    %v1168 = vmul.f32 %v1162, %v1044
    %v1169 = vmul.f32 %v1158, %v1163
    %v1170 = vadd.f32 %v1168, %v1169
    %v1171 = vtanh.pop %v1170
    %v1172 = vmul.f32 %v1167, %v1171
    %v1173 = vmax.f32 %v1172, 0.0
    %v1174 = vld [vmem:[%s4] sm:$0x1]
    %v1176 = vperm.slane %v1174, 0
    %v1178 = vmul.f32 %v1173, %v1176
    %1179 = vadd.xlane.f32.xlu0 %v1178
    %v1180 = vpop.xlane.xlu0 %1179
    %v1181 = vld [vmem:[#allocation2] sm:$0x1]
    %v1183 = vperm.slane %v1181, 0
    %v1185 = vadd.f32 %v1180, %v1183
    %v1186 = vmul.f32 %v1185, 0.5
    %v1187 = vtanh.pop %v1186
    %v1188 = vmul.f32 %v1187, 0.5
    %v1189 = vadd.f32 %v1188, 0.5
    %vm1190 = vcmask 7168
    %1191 = vst.msk [vmem:[%s6] sm:$0xff] %vm1190, %v1189
    // Predicated region
    $region38: #{tpu_custom_call.1} parent=1 // pred_check
      _
    $region39: #{tpu_custom_call.1} parent=1 // pred_check_branch
      %1193 = sbr.rel (0) target = $region41
    $region40: #{tpu_custom_call.1} parent=1 // pred_region
      _
    $region41: #{tpu_custom_call.1} parent=1 // pred_fallthru
      _
    // Predicated region
    $region42: #{tpu_custom_call.1} parent=1 // pred_check
      _
    $region43: #{tpu_custom_call.1} parent=1 // pred_check_branch
      %1195 = sbr.rel (0) target = $region45
    $region44: #{tpu_custom_call.1} parent=1 // pred_region
      _
    $region45: #{tpu_custom_call.1} parent=1 // pred_fallthru
      _
    %1196 = vsyncpa [#allocation4], 1
    %1197 = vsyncpa [#allocation6], 1

</llo_original>
